<compile_context>
chip_gen: v7x
topology: tpu7x:2x2x1
jax: 0.10.0
libtpu: 0.0.40
codegen_flags: <defaults>
</compile_context>

<pallas_src>
import math

import numpy as np
import jax
import jax.numpy as jnp
from jax.experimental import pallas as pl
from jax.experimental.pallas import tpu as pltpu


# ----------------------------------------------------------------------------------
# Host-side constant construction (numpy, compile-time).
# ----------------------------------------------------------------------------------
def _gauss_1d(sigma):
    """1-D factor of CircularGaussKernel(sigma=sigma, norm=True) + the conv padding.

    The 2-D kernel exp(-(x^2+y^2)/(2 sigma^2)) / sum  is exactly the outer product of
    this normalized 1-D vector with itself, so the blur is separable.
    """
    kernlen = int(2.0 * 3.0 * sigma + 1.0)
    if kernlen % 2 == 0:
        kernlen += 1
    half = kernlen / 2.0                       # float division (Python-3 module behaviour)
    sigma2 = 2.0 * sigma * sigma
    xs = np.linspace(-half, half, kernlen)
    g = np.exp(-(xs * xs) / sigma2)
    g = g / g.sum()
    pad = int(np.floor(half))
    return g, pad


def _blur_band_matrix(n, sigma):
    """(n, n) matrix A such that A @ x == replicate-padded 1-D Gaussian conv of x."""
    g, pad = _gauss_1d(sigma)
    a = np.zeros((n, n), dtype=np.float64)
    for i in range(n):
        for k in range(g.shape[0]):
            j = min(max(i + k - pad, 0), n - 1)   # replicate ('edge') padding folded in
            a[i, j] += g[k]
    return a.astype(np.float32)


def _subsample_matrices(h, w):
    """Selection matrices implementing avg_pool2d(kernel_size=1, stride=2)."""
    h2, w2 = (h + 1) // 2, (w + 1) // 2
    sh = np.zeros((h2, h), dtype=np.float32)
    sh[np.arange(h2), 2 * np.arange(h2)] = 1.0
    swt = np.zeros((w, w2), dtype=np.float32)
    swt[2 * np.arange(w2), np.arange(w2)] = 1.0
    return sh, swt


# ----------------------------------------------------------------------------------
# Pallas kernel: one full octave (chained blurs + next-octave subsample) per call.
# ----------------------------------------------------------------------------------
def _make_octave_kernel(num_blurs, down_idx):
    def kernel(x_ref, rh_ref, rwt_ref, sh_ref, swt_ref, *out_refs):
        lev_refs = out_refs[:num_blurs]
        next_ref = out_refs[num_blurs]

        curr = x_ref[0, :, :]                                  # (H, W) image of this grid step
        for l in range(num_blurs):                             # chained blurs, all in VMEM
            curr = jnp.dot(rh_ref[l, :, :], curr,
                           preferred_element_type=jnp.float32)
            curr = jnp.dot(curr, rwt_ref[l, :, :],
                           preferred_element_type=jnp.float32)
            lev_refs[l][0, :, :] = curr
            if l == down_idx:                                  # avg_pool2d(k=1, stride=2)
                d = jnp.dot(sh_ref[...], curr, preferred_element_type=jnp.float32)
                next_ref[0, :, :] = jnp.dot(d, swt_ref[...],
                                            preferred_element_type=jnp.float32)
    return kernel


def _run_octave(x0, blur_sigmas, down_idx):
    """x0: (B, H, W) f32.  Returns ([level_l (B,H,W) for l in range(L)], next (B,H2,W2))."""
    b, h, w = x0.shape
    num_blurs = len(blur_sigmas)
    h2, w2 = (h + 1) // 2, (w + 1) // 2

    rh = jnp.asarray(np.stack([_blur_band_matrix(h, s) for s in blur_sigmas]))     # (L, H, H)
    rwt = jnp.asarray(np.stack([_blur_band_matrix(w, s).T for s in blur_sigmas]))  # (L, W, W)
    sh_np, swt_np = _subsample_matrices(h, w)
    sh, swt = jnp.asarray(sh_np), jnp.asarray(swt_np)

    out_shape = tuple([jax.ShapeDtypeStruct((b, h, w), jnp.float32)] * num_blurs
                      + [jax.ShapeDtypeStruct((b, h2, w2), jnp.float32)])
    out_specs = tuple([pl.BlockSpec((1, h, w), lambda i: (i, 0, 0))] * num_blurs
                      + [pl.BlockSpec((1, h2, w2), lambda i: (i, 0, 0))])

    outs = pl.pallas_call(
        _make_octave_kernel(num_blurs, down_idx),
        out_shape=out_shape,
        grid_spec=pltpu.PrefetchScalarGridSpec(
            num_scalar_prefetch=0,
            grid=(b,),
            in_specs=[
                pl.BlockSpec((1, h, w), lambda i: (i, 0, 0)),          # image i
                pl.BlockSpec((num_blurs, h, h), lambda i: (0, 0, 0)),  # row blur matrices
                pl.BlockSpec((num_blurs, w, w), lambda i: (0, 0, 0)),  # col blur matrices (T)
                pl.BlockSpec((h2, h), lambda i: (0, 0)),               # row subsample
                pl.BlockSpec((w, w2), lambda i: (0, 0)),               # col subsample (T)
            ],
            out_specs=out_specs,
        ),
        compiler_params=pltpu.CompilerParams(dimension_semantics=("parallel",)),
    )(x0, rh, rwt, sh, swt)

    return list(outs[:num_blurs]), outs[num_blurs]


# ----------------------------------------------------------------------------------
# ScalePyramid forward pass.
# ----------------------------------------------------------------------------------
def scale_pyramid(x, nLevels=3, init_sigma=1.6, border=5):
    """Forward pass of ScalePyramid.  x: (B, 1, H, W) float32.

    Returns (pyr, sigmas, pixel_dists) with the same nesting as the torch module;
    pyramid entries have shape (B, 1, H_j, W_j).
    """
    assert x.ndim == 4 and x.shape[1] == 1, "ScalePyramid expects (B, 1, H, W) input"
    sigmaStep = 2.0 ** (1.0 / float(nLevels))
    minSize = 2 * border + 2 + 1
    step_factor = math.sqrt(sigmaStep * sigmaStep - 1.0)

    pixelDistance = 1.0
    curSigma = 0.5
    have_init_blur = init_sigma > curSigma
    if have_init_blur:
        init_blur_sigma = math.sqrt(init_sigma ** 2 - curSigma ** 2)
        curSigma = init_sigma

    cur_input = x[:, 0, :, :]                        # (B, H, W)
    pyr, sigmas, pixel_dists = [], [[curSigma]], [[1.0]]

    j = 0
    while True:
        # per-level blur sigmas for this octave (mirrors the torch inner loop)
        chain, lvl_sigmas = [], []
        cs = curSigma
        for _ in range(nLevels + 1):
            chain.append(cs * step_factor)
            cs *= sigmaStep
            lvl_sigmas.append(cs)
        if j == 0 and have_init_blur:
            chain = [init_blur_sigma] + chain        # init blur produces level 0 of octave 0
            down_idx = nLevels                       # subsample the output of blur #nLevels
        else:
            down_idx = nLevels - 1

        levels, nxt = _run_octave(cur_input, chain, down_idx)
        if not (j == 0 and have_init_blur):
            levels = [cur_input] + levels            # level 0 is the (unblurred) octave input

        pyr.append([lvl[:, None, :, :] for lvl in levels])
        sigmas[j].extend(lvl_sigmas)
        pixel_dists[j].extend([pixelDistance] * (nLevels + 1))

        pixelDistance *= 2.0
        curSigma = init_sigma
        h2, w2 = nxt.shape[-2], nxt.shape[-1]
        if h2 <= minSize or w2 <= minSize:
            break
        cur_input = nxt
        sigmas.append([curSigma])
        pixel_dists.append([pixelDistance])
        j += 1

    return pyr, sigmas, pixel_dists


if __name__ == "__main__":
    key = jax.random.PRNGKey(0)
    x = jax.random.normal(key, (2, 1, 32, 32), dtype=jnp.float32)

    pyr, sigmas, pixel_dists = scale_pyramid(x)
    jax.block_until_ready(pyr)

    # structural sanity checks: 32x32 with border=5 -> 2 octaves, nLevels+2 levels each
    assert len(pyr) == len(sigmas) == len(pixel_dists) == 2
    assert all(len(oct_levels) == 5 for oct_levels in pyr)
    assert pyr[0][0].shape == (2, 1, 32, 32) and pyr[1][0].shape == (2, 1, 16, 16)

    print("KERNEL_OK")
</pallas_src>

<mosaic_0001>
module attributes {stable_mosaic.version = 11 : i64} {
  func.func @kernel(%arg0: i32, %arg1: memref<1x32x32xf32, #tpu.memory_space<vmem>>, %arg2: memref<5x32x32xf32, #tpu.memory_space<vmem>>, %arg3: memref<5x32x32xf32, #tpu.memory_space<vmem>>, %arg4: memref<16x32xf32, #tpu.memory_space<vmem>>, %arg5: memref<32x16xf32, #tpu.memory_space<vmem>>, %arg6: memref<1x32x32xf32, #tpu.memory_space<vmem>>, %arg7: memref<1x32x32xf32, #tpu.memory_space<vmem>>, %arg8: memref<1x32x32xf32, #tpu.memory_space<vmem>>, %arg9: memref<1x32x32xf32, #tpu.memory_space<vmem>>, %arg10: memref<1x32x32xf32, #tpu.memory_space<vmem>>, %arg11: memref<1x16x16xf32, #tpu.memory_space<vmem>>) attributes {dimension_semantics = [#tpu.dimension_semantics<parallel>], iteration_bounds = array<i64: 2>, scalar_prefetch = 0 : i64, scratch_operands = 0 : i64, tpu.core_type = #tpu.core_type<tc>, window_params = [{transform_indices = @transform_0, window_bounds = array<i64: 1, 32, 32>}, {pipeline_mode = #tpu.pipeline_mode<synchronous>, transform_indices = @transform_1, window_bounds = array<i64: 5, 32, 32>}, {pipeline_mode = #tpu.pipeline_mode<synchronous>, transform_indices = @transform_2, window_bounds = array<i64: 5, 32, 32>}, {pipeline_mode = #tpu.pipeline_mode<synchronous>, transform_indices = @transform_3, window_bounds = array<i64: 16, 32>}, {pipeline_mode = #tpu.pipeline_mode<synchronous>, transform_indices = @transform_4, window_bounds = array<i64: 32, 16>}, {transform_indices = @transform_5, window_bounds = array<i64: 1, 32, 32>}, {transform_indices = @transform_6, window_bounds = array<i64: 1, 32, 32>}, {transform_indices = @transform_7, window_bounds = array<i64: 1, 32, 32>}, {transform_indices = @transform_8, window_bounds = array<i64: 1, 32, 32>}, {transform_indices = @transform_9, window_bounds = array<i64: 1, 32, 32>}, {transform_indices = @transform_10, window_bounds = array<i64: 1, 16, 16>}]} {
    %c0 = arith.constant 0 : index
    %c0_0 = arith.constant 0 : index
    %c0_1 = arith.constant 0 : index
    %0 = vector.load %arg1[%c0, %c0_0, %c0_1] : memref<1x32x32xf32, #tpu.memory_space<vmem>>, vector<1x32x32xf32>
    %1 = vector.shape_cast %0 : vector<1x32x32xf32> to vector<32x32xf32>
    %c0_2 = arith.constant 0 : index
    %c0_3 = arith.constant 0 : index
    %c0_4 = arith.constant 0 : index
    %2 = vector.load %arg2[%c0_2, %c0_3, %c0_4] : memref<5x32x32xf32, #tpu.memory_space<vmem>>, vector<1x32x32xf32>
    %3 = vector.shape_cast %2 : vector<1x32x32xf32> to vector<32x32xf32>
    %cst = arith.constant dense<0.000000e+00> : vector<32x32xf32>
    %4 = tpu.matmul %3, %1, %cst {dimension_numbers = #tpu.dot_dimension_numbers<[1], [0], [0], [1], [0, 0, 1, 1], [], []>} : vector<32x32xf32>, vector<32x32xf32>, vector<32x32xf32> -> vector<32x32xf32>
    %c0_5 = arith.constant 0 : index
    %c0_6 = arith.constant 0 : index
    %c0_7 = arith.constant 0 : index
    %5 = vector.load %arg3[%c0_5, %c0_6, %c0_7] : memref<5x32x32xf32, #tpu.memory_space<vmem>>, vector<1x32x32xf32>
    %6 = vector.shape_cast %5 : vector<1x32x32xf32> to vector<32x32xf32>
    %cst_8 = arith.constant dense<0.000000e+00> : vector<32x32xf32>
    %7 = tpu.matmul %4, %6, %cst_8 {dimension_numbers = #tpu.dot_dimension_numbers<[1], [0], [0], [1], [0, 0, 1, 1], [], []>} : vector<32x32xf32>, vector<32x32xf32>, vector<32x32xf32> -> vector<32x32xf32>
    %c0_9 = arith.constant 0 : index
    %c0_10 = arith.constant 0 : index
    %c0_11 = arith.constant 0 : index
    %8 = vector.load %arg6[%c0_9, %c0_10, %c0_11] : memref<1x32x32xf32, #tpu.memory_space<vmem>>, vector<1x32x32xf32>
    %9 = vector.shape_cast %8 : vector<1x32x32xf32> to vector<32x32xf32>
    %10 = vector.shape_cast %7 : vector<32x32xf32> to vector<1x32x32xf32>
    tpu.vector_store %arg6[%c0_9, %c0_10, %c0_11], %10 {strides = array<i32>} : memref<1x32x32xf32, #tpu.memory_space<vmem>>, vector<1x32x32xf32>,
    %c1 = arith.constant 1 : index
    %c0_12 = arith.constant 0 : index
    %c0_13 = arith.constant 0 : index
    %11 = vector.load %arg2[%c1, %c0_12, %c0_13] : memref<5x32x32xf32, #tpu.memory_space<vmem>>, vector<1x32x32xf32>
    %12 = vector.shape_cast %11 : vector<1x32x32xf32> to vector<32x32xf32>
    %cst_14 = arith.constant dense<0.000000e+00> : vector<32x32xf32>
    %13 = tpu.matmul %12, %7, %cst_14 {dimension_numbers = #tpu.dot_dimension_numbers<[1], [0], [0], [1], [0, 0, 1, 1], [], []>} : vector<32x32xf32>, vector<32x32xf32>, vector<32x32xf32> -> vector<32x32xf32>
    %c1_15 = arith.constant 1 : index
    %c0_16 = arith.constant 0 : index
    %c0_17 = arith.constant 0 : index
    %14 = vector.load %arg3[%c1_15, %c0_16, %c0_17] : memref<5x32x32xf32, #tpu.memory_space<vmem>>, vector<1x32x32xf32>
    %15 = vector.shape_cast %14 : vector<1x32x32xf32> to vector<32x32xf32>
    %cst_18 = arith.constant dense<0.000000e+00> : vector<32x32xf32>
    %16 = tpu.matmul %13, %15, %cst_18 {dimension_numbers = #tpu.dot_dimension_numbers<[1], [0], [0], [1], [0, 0, 1, 1], [], []>} : vector<32x32xf32>, vector<32x32xf32>, vector<32x32xf32> -> vector<32x32xf32>
    %c0_19 = arith.constant 0 : index
    %c0_20 = arith.constant 0 : index
    %c0_21 = arith.constant 0 : index
    %17 = vector.load %arg7[%c0_19, %c0_20, %c0_21] : memref<1x32x32xf32, #tpu.memory_space<vmem>>, vector<1x32x32xf32>
    %18 = vector.shape_cast %17 : vector<1x32x32xf32> to vector<32x32xf32>
    %19 = vector.shape_cast %16 : vector<32x32xf32> to vector<1x32x32xf32>
    tpu.vector_store %arg7[%c0_19, %c0_20, %c0_21], %19 {strides = array<i32>} : memref<1x32x32xf32, #tpu.memory_space<vmem>>, vector<1x32x32xf32>,
    %c2 = arith.constant 2 : index
    %c0_22 = arith.constant 0 : index
    %c0_23 = arith.constant 0 : index
    %20 = vector.load %arg2[%c2, %c0_22, %c0_23] : memref<5x32x32xf32, #tpu.memory_space<vmem>>, vector<1x32x32xf32>
    %21 = vector.shape_cast %20 : vector<1x32x32xf32> to vector<32x32xf32>
    %cst_24 = arith.constant dense<0.000000e+00> : vector<32x32xf32>
    %22 = tpu.matmul %21, %16, %cst_24 {dimension_numbers = #tpu.dot_dimension_numbers<[1], [0], [0], [1], [0, 0, 1, 1], [], []>} : vector<32x32xf32>, vector<32x32xf32>, vector<32x32xf32> -> vector<32x32xf32>
    %c2_25 = arith.constant 2 : index
    %c0_26 = arith.constant 0 : index
    %c0_27 = arith.constant 0 : index
    %23 = vector.load %arg3[%c2_25, %c0_26, %c0_27] : memref<5x32x32xf32, #tpu.memory_space<vmem>>, vector<1x32x32xf32>
    %24 = vector.shape_cast %23 : vector<1x32x32xf32> to vector<32x32xf32>
    %cst_28 = arith.constant dense<0.000000e+00> : vector<32x32xf32>
    %25 = tpu.matmul %22, %24, %cst_28 {dimension_numbers = #tpu.dot_dimension_numbers<[1], [0], [0], [1], [0, 0, 1, 1], [], []>} : vector<32x32xf32>, vector<32x32xf32>, vector<32x32xf32> -> vector<32x32xf32>
    %c0_29 = arith.constant 0 : index
    %c0_30 = arith.constant 0 : index
    %c0_31 = arith.constant 0 : index
    %26 = vector.load %arg8[%c0_29, %c0_30, %c0_31] : memref<1x32x32xf32, #tpu.memory_space<vmem>>, vector<1x32x32xf32>
    %27 = vector.shape_cast %26 : vector<1x32x32xf32> to vector<32x32xf32>
    %28 = vector.shape_cast %25 : vector<32x32xf32> to vector<1x32x32xf32>
    tpu.vector_store %arg8[%c0_29, %c0_30, %c0_31], %28 {strides = array<i32>} : memref<1x32x32xf32, #tpu.memory_space<vmem>>, vector<1x32x32xf32>,
    %c3 = arith.constant 3 : index
    %c0_32 = arith.constant 0 : index
    %c0_33 = arith.constant 0 : index
    %29 = vector.load %arg2[%c3, %c0_32, %c0_33] : memref<5x32x32xf32, #tpu.memory_space<vmem>>, vector<1x32x32xf32>
    %30 = vector.shape_cast %29 : vector<1x32x32xf32> to vector<32x32xf32>
    %cst_34 = arith.constant dense<0.000000e+00> : vector<32x32xf32>
    %31 = tpu.matmul %30, %25, %cst_34 {dimension_numbers = #tpu.dot_dimension_numbers<[1], [0], [0], [1], [0, 0, 1, 1], [], []>} : vector<32x32xf32>, vector<32x32xf32>, vector<32x32xf32> -> vector<32x32xf32>
    %c3_35 = arith.constant 3 : index
    %c0_36 = arith.constant 0 : index
    %c0_37 = arith.constant 0 : index
    %32 = vector.load %arg3[%c3_35, %c0_36, %c0_37] : memref<5x32x32xf32, #tpu.memory_space<vmem>>, vector<1x32x32xf32>
    %33 = vector.shape_cast %32 : vector<1x32x32xf32> to vector<32x32xf32>
    %cst_38 = arith.constant dense<0.000000e+00> : vector<32x32xf32>
    %34 = tpu.matmul %31, %33, %cst_38 {dimension_numbers = #tpu.dot_dimension_numbers<[1], [0], [0], [1], [0, 0, 1, 1], [], []>} : vector<32x32xf32>, vector<32x32xf32>, vector<32x32xf32> -> vector<32x32xf32>
    %c0_39 = arith.constant 0 : index
    %c0_40 = arith.constant 0 : index
    %c0_41 = arith.constant 0 : index
    %35 = vector.load %arg9[%c0_39, %c0_40, %c0_41] : memref<1x32x32xf32, #tpu.memory_space<vmem>>, vector<1x32x32xf32>
    %36 = vector.shape_cast %35 : vector<1x32x32xf32> to vector<32x32xf32>
    %37 = vector.shape_cast %34 : vector<32x32xf32> to vector<1x32x32xf32>
    tpu.vector_store %arg9[%c0_39, %c0_40, %c0_41], %37 {strides = array<i32>} : memref<1x32x32xf32, #tpu.memory_space<vmem>>, vector<1x32x32xf32>,
    %c0_42 = arith.constant 0 : index
    %c0_43 = arith.constant 0 : index
    %38 = vector.load %arg4[%c0_42, %c0_43] : memref<16x32xf32, #tpu.memory_space<vmem>>, vector<16x32xf32>
    %cst_44 = arith.constant dense<0.000000e+00> : vector<16x32xf32>
    %39 = tpu.matmul %38, %34, %cst_44 {dimension_numbers = #tpu.dot_dimension_numbers<[1], [0], [0], [1], [0, 0, 1, 1], [], []>} : vector<16x32xf32>, vector<32x32xf32>, vector<16x32xf32> -> vector<16x32xf32>
    %c0_45 = arith.constant 0 : index
    %c0_46 = arith.constant 0 : index
    %40 = vector.load %arg5[%c0_45, %c0_46] : memref<32x16xf32, #tpu.memory_space<vmem>>, vector<32x16xf32>
    %cst_47 = arith.constant dense<0.000000e+00> : vector<16x16xf32>
    %41 = tpu.matmul %39, %40, %cst_47 {dimension_numbers = #tpu.dot_dimension_numbers<[1], [0], [0], [1], [0, 0, 1, 1], [], []>} : vector<16x32xf32>, vector<32x16xf32>, vector<16x16xf32> -> vector<16x16xf32>
    %c0_48 = arith.constant 0 : index
    %c0_49 = arith.constant 0 : index
    %c0_50 = arith.constant 0 : index
    %42 = vector.load %arg11[%c0_48, %c0_49, %c0_50] : memref<1x16x16xf32, #tpu.memory_space<vmem>>, vector<1x16x16xf32>
    %43 = vector.shape_cast %42 : vector<1x16x16xf32> to vector<16x16xf32>
    %44 = vector.shape_cast %41 : vector<16x16xf32> to vector<1x16x16xf32>
    tpu.vector_store %arg11[%c0_48, %c0_49, %c0_50], %44 {strides = array<i32>} : memref<1x16x16xf32, #tpu.memory_space<vmem>>, vector<1x16x16xf32>,
    %c4 = arith.constant 4 : index
    %c0_51 = arith.constant 0 : index
    %c0_52 = arith.constant 0 : index
    %45 = vector.load %arg2[%c4, %c0_51, %c0_52] : memref<5x32x32xf32, #tpu.memory_space<vmem>>, vector<1x32x32xf32>
    %46 = vector.shape_cast %45 : vector<1x32x32xf32> to vector<32x32xf32>
    %cst_53 = arith.constant dense<0.000000e+00> : vector<32x32xf32>
    %47 = tpu.matmul %46, %34, %cst_53 {dimension_numbers = #tpu.dot_dimension_numbers<[1], [0], [0], [1], [0, 0, 1, 1], [], []>} : vector<32x32xf32>, vector<32x32xf32>, vector<32x32xf32> -> vector<32x32xf32>
    %c4_54 = arith.constant 4 : index
    %c0_55 = arith.constant 0 : index
    %c0_56 = arith.constant 0 : index
    %48 = vector.load %arg3[%c4_54, %c0_55, %c0_56] : memref<5x32x32xf32, #tpu.memory_space<vmem>>, vector<1x32x32xf32>
    %49 = vector.shape_cast %48 : vector<1x32x32xf32> to vector<32x32xf32>
    %cst_57 = arith.constant dense<0.000000e+00> : vector<32x32xf32>
    %50 = tpu.matmul %47, %49, %cst_57 {dimension_numbers = #tpu.dot_dimension_numbers<[1], [0], [0], [1], [0, 0, 1, 1], [], []>} : vector<32x32xf32>, vector<32x32xf32>, vector<32x32xf32> -> vector<32x32xf32>
    %c0_58 = arith.constant 0 : index
    %c0_59 = arith.constant 0 : index
    %c0_60 = arith.constant 0 : index
    %51 = vector.load %arg10[%c0_58, %c0_59, %c0_60] : memref<1x32x32xf32, #tpu.memory_space<vmem>>, vector<1x32x32xf32>
    %52 = vector.shape_cast %51 : vector<1x32x32xf32> to vector<32x32xf32>
    %53 = vector.shape_cast %50 : vector<32x32xf32> to vector<1x32x32xf32>
    tpu.vector_store %arg10[%c0_58, %c0_59, %c0_60], %53 {strides = array<i32>} : memref<1x32x32xf32, #tpu.memory_space<vmem>>, vector<1x32x32xf32>,
    return
  }
  func.func @transform_0(%arg0: i32) -> (i32, i32, i32) {
    %c0_i32 = arith.constant 0 : i32
    %c0_i32_0 = arith.constant 0 : i32
    %c0_i32_1 = arith.constant 0 : i32
    return %arg0, %c0_i32, %c0_i32_0 : i32, i32, i32
  }
  func.func @transform_1(%arg0: i32) -> (i32, i32, i32) {
    %c0_i32 = arith.constant 0 : i32
    %c0_i32_0 = arith.constant 0 : i32
    %c0_i32_1 = arith.constant 0 : i32
    %c0_i32_2 = arith.constant 0 : i32
    return %c0_i32, %c0_i32_0, %c0_i32_1 : i32, i32, i32
  }
  func.func @transform_2(%arg0: i32) -> (i32, i32, i32) {
    %c0_i32 = arith.constant 0 : i32
    %c0_i32_0 = arith.constant 0 : i32
    %c0_i32_1 = arith.constant 0 : i32
    %c0_i32_2 = arith.constant 0 : i32
    return %c0_i32, %c0_i32_0, %c0_i32_1 : i32, i32, i32
  }
  func.func @transform_3(%arg0: i32) -> (i32, i32) {
    %c0_i32 = arith.constant 0 : i32
    %c0_i32_0 = arith.constant 0 : i32
    %c0_i32_1 = arith.constant 0 : i32
    return %c0_i32, %c0_i32_0 : i32, i32
  }
  func.func @transform_4(%arg0: i32) -> (i32, i32) {
    %c0_i32 = arith.constant 0 : i32
    %c0_i32_0 = arith.constant 0 : i32
    %c0_i32_1 = arith.constant 0 : i32
    return %c0_i32, %c0_i32_0 : i32, i32
  }
  func.func @transform_5(%arg0: i32) -> (i32, i32, i32) {
    %c0_i32 = arith.constant 0 : i32
    %c0_i32_0 = arith.constant 0 : i32
    %c0_i32_1 = arith.constant 0 : i32
    return %arg0, %c0_i32, %c0_i32_0 : i32, i32, i32
  }
  func.func @transform_6(%arg0: i32) -> (i32, i32, i32) {
    %c0_i32 = arith.constant 0 : i32
    %c0_i32_0 = arith.constant 0 : i32
    %c0_i32_1 = arith.constant 0 : i32
    return %arg0, %c0_i32, %c0_i32_0 : i32, i32, i32
  }
  func.func @transform_7(%arg0: i32) -> (i32, i32, i32) {
    %c0_i32 = arith.constant 0 : i32
    %c0_i32_0 = arith.constant 0 : i32
    %c0_i32_1 = arith.constant 0 : i32
    return %arg0, %c0_i32, %c0_i32_0 : i32, i32, i32
  }
  func.func @transform_8(%arg0: i32) -> (i32, i32, i32) {
    %c0_i32 = arith.constant 0 : i32
    %c0_i32_0 = arith.constant 0 : i32
    %c0_i32_1 = arith.constant 0 : i32
    return %arg0, %c0_i32, %c0_i32_0 : i32, i32, i32
  }
  func.func @transform_9(%arg0: i32) -> (i32, i32, i32) {
    %c0_i32 = arith.constant 0 : i32
    %c0_i32_0 = arith.constant 0 : i32
    %c0_i32_1 = arith.constant 0 : i32
    return %arg0, %c0_i32, %c0_i32_0 : i32, i32, i32
  }
  func.func @transform_10(%arg0: i32) -> (i32, i32, i32) {
    %c0_i32 = arith.constant 0 : i32
    %c0_i32_0 = arith.constant 0 : i32
    %c0_i32_1 = arith.constant 0 : i32
    return %arg0, %c0_i32, %c0_i32_0 : i32, i32, i32
  }
}

</mosaic_0001>

<llo_original>
// kernel: tpu_custom_call.1
$region0: #{tpu_custom_call.1}
  #allocation0 [shape = 'u32[]', space=smem, size = 0x4, offset = 0x4, fixed_abs, tag = 'smem constant byte address 0x4 - core index']
  #allocation1 [shape = 'u32[144,128]{1,0:T(1,128)}', space=vmem, size = 0x12000, scoped, tag = 'internal scratch']
  %s0 = inlined_call_operand.hbm [shape: f32[2,32,32], index: 0, kind: input, shape index: {}]
  %s1 = inlined_call_operand.hbm [shape: f32[5,32,32], index: 1, kind: input, shape index: {}]
  %s2 = inlined_call_operand.hbm [shape: f32[5,32,32], index: 2, kind: input, shape index: {}]
  %s3 = inlined_call_operand.vmem [shape: f32[16,32], index: 3, kind: input, shape index: {}]
  %s4 = inlined_call_operand.vmem [shape: f32[32,16], index: 4, kind: input, shape index: {}]
  %s5 = inlined_call_operand.hbm [shape: f32[2,32,32], index: 5, kind: output, shape index: {0}]
  %s6 = inlined_call_operand.hbm [shape: f32[2,32,32], index: 6, kind: output, shape index: {1}]
  %s7 = inlined_call_operand.hbm [shape: f32[2,32,32], index: 7, kind: output, shape index: {2}]
  %s8 = inlined_call_operand.hbm [shape: f32[2,32,32], index: 8, kind: output, shape index: {3}]
  %s9 = inlined_call_operand.hbm [shape: f32[2,32,32], index: 9, kind: output, shape index: {4}]
  %s10 = inlined_call_operand.hbm [shape: f32[2,16,16], index: 10, kind: output, shape index: {5}]
  %11 = xla_tuple %s5, %s6, %s7, %s8, %s9, %s10
  %s12 = sld [smem:[#allocation0]]
  $region105: #{tpu_custom_call.1} parent=0
    _
  %s14 = ssub.s32 1, %s12
  %s15 = scalar_select 0, %s14, %s12
  $region1: #{tpu_custom_call.1} parent=0
    #allocation2 [shape = 'u8[32768]{0}', space=vmem, size = 0x8000, scoped, tag = 'input window, operand 0']
    #allocation3 [shape = 's32[2]{0}', space=sflag, size = 0x8, scoped, tag = 'scoped memory for tpu_custom_call.1']
    #allocation4 [shape = 's32[2]{0}', space=sflag, size = 0x8, scoped, tag = 'scoped memory for tpu_custom_call.1']
    #allocation5 [shape = 'u8[81920]{0}', space=vmem, size = 0x14000, scoped, tag = 'input window, operand 1, single buffered']
    #allocation6 [shape = 's32[1]{0}', space=sflag, size = 0x4, scoped, tag = 'scoped memory for tpu_custom_call.1']
    #allocation7 [shape = 'u8[81920]{0}', space=vmem, size = 0x14000, scoped, tag = 'input window, operand 2, single buffered']
    #allocation8 [shape = 'u8[32768]{0}', space=vmem, size = 0x8000, scoped, tag = 'output window, operand 0']
    #allocation9 [shape = 'u8[32768]{0}', space=vmem, size = 0x8000, scoped, tag = 'output window, operand 1']
    #allocation10 [shape = 's32[2]{0}', space=sflag, size = 0x8, scoped, tag = 'scoped memory for tpu_custom_call.1']
    #allocation11 [shape = 'u8[32768]{0}', space=vmem, size = 0x8000, scoped, tag = 'output window, operand 2']
    #allocation12 [shape = 'u8[32768]{0}', space=vmem, size = 0x8000, scoped, tag = 'output window, operand 3']
    #allocation13 [shape = 's32[2]{0}', space=sflag, size = 0x8, scoped, tag = 'scoped memory for tpu_custom_call.1']
    #allocation14 [shape = 'u8[32768]{0}', space=vmem, size = 0x8000, scoped, tag = 'output window, operand 4']
    #allocation15 [shape = 'u8[16384]{0}', space=vmem, size = 0x4000, scoped, tag = 'output window, operand 5']
    #allocation16 [shape = 's32[2]{0}', space=sflag, size = 0x8, scoped, tag = 'scoped memory for tpu_custom_call.1']
    %16 = vsyncpa [#allocation3], 0
    %s17 = scalar_lea.sflag [#allocation3], 1
    %18 = vsyncpa %s17, 0
    %19 = vsyncpa [#allocation6], 0
    %20 = vsyncpa [#allocation4], 0
    %s21 = scalar_lea.sflag [#allocation4], 1
    %22 = vsyncpa %s21, 0
    %23 = vsyncpa [#allocation10], 0
    %s24 = scalar_lea.sflag [#allocation10], 1
    %25 = vsyncpa %s24, 0
    %26 = vsyncpa [#allocation13], 0
    %s27 = scalar_lea.sflag [#allocation13], 1
    %28 = vsyncpa %s27, 0
    %29 = vsyncpa [#allocation16], 0
    %s30 = scalar_lea.sflag [#allocation16], 1
    %31 = vsyncpa %s30, 0
    loop: start=0, step=1, limit=4
    $region2: #{tpu_custom_call.1} parent=1 // loop_pre_header
      _
    $region3: #{tpu_custom_call.1} parent=1 // loop_header
      %s33 = sphi 0, %s37
      %p34 = scmp.ge.s32.totalorder %s33, 4
      %s43 = sphi 0, %s45
      %s46 = sphi 0, %s43
      %s47 = sphi 0, %s46
      %s63 = sphi 0, %s47
      %s67 = sphi 0, %s67
      %s69 = sphi 0, %s67
      %s70 = sphi 0, %s69
      %s84 = sphi 0, %s70
      %s88 = sphi 0, %s88
      %s90 = sphi 0, %s88
      %s91 = sphi 0, %s90
      %s105 = sphi 0, %s91
      %s109 = sphi 0, %s109
      %s111 = sphi 0, %s109
      %s112 = sphi 0, %s111
      %s126 = sphi 0, %s112
      %s130 = sphi 0, %s130
      %s132 = sphi 0, %s130
      %s133 = sphi 0, %s132
      %s147 = sphi 0, %s133
      %s153 = sphi 0, %s155
      %s156 = sphi 0, %s153
      %s157 = sphi 0, %s156
      %s173 = sphi 0, %s157
      %s179 = sphi 0, %s181
      %s182 = sphi 0, %s179
      %s183 = sphi 0, %s182
      %s199 = sphi 0, %s183
      %s205 = sphi 0, %s207
      %s208 = sphi 0, %s205
      %s209 = sphi 0, %s208
      %s225 = sphi 0, %s209
      %s231 = sphi 0, %s233
      %s234 = sphi 0, %s231
      %s235 = sphi 0, %s234
      %s251 = sphi 0, %s235
      %s257 = sphi 0, %s259
      %s260 = sphi 0, %s257
      %s261 = sphi 0, %s260
      %s277 = sphi 0, %s261
      %s283 = sphi 0, %s285
      %s286 = sphi 0, %s283
      %s287 = sphi 0, %s286
      %s303 = sphi 0, %s287
    $region4: #{tpu_custom_call.1} parent=1 // loop_header_branch
      %36 = sbr.rel (%p34) target = $region8
    $region5: #{tpu_custom_call.1} parent=1 // loop_body
      %s38 = ssub.s32 %s33, 1
      %s39 = ssub.s32 %s33, 2
      %s40 = sadd.s32 %s33, 1
      %s41 = ssub.s32 %s33, %s40
      %p42 = scmp.eq.s32.totalorder %s41, 0
      %s44 = sadd.s32 %s43, 1
      %s45 = scalar_select %p42, %s43, %s44
      %p48 = pneg %p42
      %p49 = scmp.eq.s32.totalorder %s33, 1
      %p50 = por %p48, %p49
      %p51 = scmp.ne.s32.totalorder %s43, %s46
      %p52 = scmp.eq.s32.totalorder %s33, 0
      %p53 = por %p51, %p52
      %p54 = scmp.ne.s32.totalorder %s43, %s46
      %p55 = scmp.eq.s32.totalorder %s38, 1
      %p56 = por %p54, %p55
      %p57 = scmp.ne.s32.totalorder %s46, %s47
      %p58 = scmp.eq.s32.totalorder %s38, 0
      %p59 = por %p57, %p58
      %p60 = scmp.ne.s32.totalorder %s46, %s47
      %p61 = scmp.eq.s32.totalorder %s39, 1
      %p62 = por %p60, %p61
      %p64 = scmp.ne.s32.totalorder %s47, %s63
      %p65 = scmp.eq.s32.totalorder %s39, 0
      %p66 = por %p64, %p65
      %s68 = sadd.s32 %s67, 1
      %p71 = scmp.eq.s32.totalorder %s33, 1
      %p72 = scmp.ne.s32.totalorder %s67, %s69
      %p73 = scmp.eq.s32.totalorder %s33, 0
      %p74 = por %p72, %p73
      %p75 = scmp.ne.s32.totalorder %s67, %s69
      %p76 = scmp.eq.s32.totalorder %s38, 1
      %p77 = por %p75, %p76
      %p78 = scmp.ne.s32.totalorder %s69, %s70
      %p79 = scmp.eq.s32.totalorder %s38, 0
      %p80 = por %p78, %p79
      %p81 = scmp.ne.s32.totalorder %s69, %s70
      %p82 = scmp.eq.s32.totalorder %s39, 1
      %p83 = por %p81, %p82
      %p85 = scmp.ne.s32.totalorder %s70, %s84
      %p86 = scmp.eq.s32.totalorder %s39, 0
      %p87 = por %p85, %p86
      %s89 = sadd.s32 %s88, 1
      %p92 = scmp.eq.s32.totalorder %s33, 1
      %p93 = scmp.ne.s32.totalorder %s88, %s90
      %p94 = scmp.eq.s32.totalorder %s33, 0
      %p95 = por %p93, %p94
      %p96 = scmp.ne.s32.totalorder %s88, %s90
      %p97 = scmp.eq.s32.totalorder %s38, 1
      %p98 = por %p96, %p97
      %p99 = scmp.ne.s32.totalorder %s90, %s91
      %p100 = scmp.eq.s32.totalorder %s38, 0
      %p101 = por %p99, %p100
      %p102 = scmp.ne.s32.totalorder %s90, %s91
      %p103 = scmp.eq.s32.totalorder %s39, 1
      %p104 = por %p102, %p103
      %p106 = scmp.ne.s32.totalorder %s91, %s105
      %p107 = scmp.eq.s32.totalorder %s39, 0
      %p108 = por %p106, %p107
      %s110 = sadd.s32 %s109, 1
      %p113 = scmp.eq.s32.totalorder %s33, 1
      %p114 = scmp.ne.s32.totalorder %s109, %s111
      %p115 = scmp.eq.s32.totalorder %s33, 0
      %p116 = por %p114, %p115
      %p117 = scmp.ne.s32.totalorder %s109, %s111
      %p118 = scmp.eq.s32.totalorder %s38, 1
      %p119 = por %p117, %p118
      %p120 = scmp.ne.s32.totalorder %s111, %s112
      %p121 = scmp.eq.s32.totalorder %s38, 0
      %p122 = por %p120, %p121
      %p123 = scmp.ne.s32.totalorder %s111, %s112
      %p124 = scmp.eq.s32.totalorder %s39, 1
      %p125 = por %p123, %p124
      %p127 = scmp.ne.s32.totalorder %s112, %s126
      %p128 = scmp.eq.s32.totalorder %s39, 0
      %p129 = por %p127, %p128
      %s131 = sadd.s32 %s130, 1
      %p134 = scmp.eq.s32.totalorder %s33, 1
      %p135 = scmp.ne.s32.totalorder %s130, %s132
      %p136 = scmp.eq.s32.totalorder %s33, 0
      %p137 = por %p135, %p136
      %p138 = scmp.ne.s32.totalorder %s130, %s132
      %p139 = scmp.eq.s32.totalorder %s38, 1
      %p140 = por %p138, %p139
      %p141 = scmp.ne.s32.totalorder %s132, %s133
      %p142 = scmp.eq.s32.totalorder %s38, 0
      %p143 = por %p141, %p142
      %p144 = scmp.ne.s32.totalorder %s132, %s133
      %p145 = scmp.eq.s32.totalorder %s39, 1
      %p146 = por %p144, %p145
      %p148 = scmp.ne.s32.totalorder %s133, %s147
      %p149 = scmp.eq.s32.totalorder %s39, 0
      %p150 = por %p148, %p149
      %s151 = ssub.s32 %s33, %s40
      %p152 = scmp.eq.s32.totalorder %s151, 0
      %s154 = sadd.s32 %s153, 1
      %s155 = scalar_select %p152, %s153, %s154
      %p158 = pneg %p152
      %p159 = scmp.eq.s32.totalorder %s33, 1
      %p160 = por %p158, %p159
      %p161 = scmp.ne.s32.totalorder %s153, %s156
      %p162 = scmp.eq.s32.totalorder %s33, 0
      %p163 = por %p161, %p162
      %p164 = scmp.ne.s32.totalorder %s153, %s156
      %p165 = scmp.eq.s32.totalorder %s38, 1
      %p166 = por %p164, %p165
      %p167 = scmp.ne.s32.totalorder %s156, %s157
      %p168 = scmp.eq.s32.totalorder %s38, 0
      %p169 = por %p167, %p168
      %p170 = scmp.ne.s32.totalorder %s156, %s157
      %p171 = scmp.eq.s32.totalorder %s39, 1
      %p172 = por %p170, %p171
      %p174 = scmp.ne.s32.totalorder %s157, %s173
      %p175 = scmp.eq.s32.totalorder %s39, 0
      %p176 = por %p174, %p175
      %s177 = ssub.s32 %s33, %s40
      %p178 = scmp.eq.s32.totalorder %s177, 0
      %s180 = sadd.s32 %s179, 1
      %s181 = scalar_select %p178, %s179, %s180
      %p184 = pneg %p178
      %p185 = scmp.eq.s32.totalorder %s33, 1
      %p186 = por %p184, %p185
      %p187 = scmp.ne.s32.totalorder %s179, %s182
      %p188 = scmp.eq.s32.totalorder %s33, 0
      %p189 = por %p187, %p188
      %p190 = scmp.ne.s32.totalorder %s179, %s182
      %p191 = scmp.eq.s32.totalorder %s38, 1
      %p192 = por %p190, %p191
      %p193 = scmp.ne.s32.totalorder %s182, %s183
      %p194 = scmp.eq.s32.totalorder %s38, 0
      %p195 = por %p193, %p194
      %p196 = scmp.ne.s32.totalorder %s182, %s183
      %p197 = scmp.eq.s32.totalorder %s39, 1
      %p198 = por %p196, %p197
      %p200 = scmp.ne.s32.totalorder %s183, %s199
      %p201 = scmp.eq.s32.totalorder %s39, 0
      %p202 = por %p200, %p201
      %s203 = ssub.s32 %s33, %s40
      %p204 = scmp.eq.s32.totalorder %s203, 0
      %s206 = sadd.s32 %s205, 1
      %s207 = scalar_select %p204, %s205, %s206
      %p210 = pneg %p204
      %p211 = scmp.eq.s32.totalorder %s33, 1
      %p212 = por %p210, %p211
      %p213 = scmp.ne.s32.totalorder %s205, %s208
      %p214 = scmp.eq.s32.totalorder %s33, 0
      %p215 = por %p213, %p214
      %p216 = scmp.ne.s32.totalorder %s205, %s208
      %p217 = scmp.eq.s32.totalorder %s38, 1
      %p218 = por %p216, %p217
      %p219 = scmp.ne.s32.totalorder %s208, %s209
      %p220 = scmp.eq.s32.totalorder %s38, 0
      %p221 = por %p219, %p220
      %p222 = scmp.ne.s32.totalorder %s208, %s209
      %p223 = scmp.eq.s32.totalorder %s39, 1
      %p224 = por %p222, %p223
      %p226 = scmp.ne.s32.totalorder %s209, %s225
      %p227 = scmp.eq.s32.totalorder %s39, 0
      %p228 = por %p226, %p227
      %s229 = ssub.s32 %s33, %s40
      %p230 = scmp.eq.s32.totalorder %s229, 0
      %s232 = sadd.s32 %s231, 1
      %s233 = scalar_select %p230, %s231, %s232
      %p236 = pneg %p230
      %p237 = scmp.eq.s32.totalorder %s33, 1
      %p238 = por %p236, %p237
      %p239 = scmp.ne.s32.totalorder %s231, %s234
      %p240 = scmp.eq.s32.totalorder %s33, 0
      %p241 = por %p239, %p240
      %p242 = scmp.ne.s32.totalorder %s231, %s234
      %p243 = scmp.eq.s32.totalorder %s38, 1
      %p244 = por %p242, %p243
      %p245 = scmp.ne.s32.totalorder %s234, %s235
      %p246 = scmp.eq.s32.totalorder %s38, 0
      %p247 = por %p245, %p246
      %p248 = scmp.ne.s32.totalorder %s234, %s235
      %p249 = scmp.eq.s32.totalorder %s39, 1
      %p250 = por %p248, %p249
      %p252 = scmp.ne.s32.totalorder %s235, %s251
      %p253 = scmp.eq.s32.totalorder %s39, 0
      %p254 = por %p252, %p253
      %s255 = ssub.s32 %s33, %s40
      %p256 = scmp.eq.s32.totalorder %s255, 0
      %s258 = sadd.s32 %s257, 1
      %s259 = scalar_select %p256, %s257, %s258
      %p262 = pneg %p256
      %p263 = scmp.eq.s32.totalorder %s33, 1
      %p264 = por %p262, %p263
      %p265 = scmp.ne.s32.totalorder %s257, %s260
      %p266 = scmp.eq.s32.totalorder %s33, 0
      %p267 = por %p265, %p266
      %p268 = scmp.ne.s32.totalorder %s257, %s260
      %p269 = scmp.eq.s32.totalorder %s38, 1
      %p270 = por %p268, %p269
      %p271 = scmp.ne.s32.totalorder %s260, %s261
      %p272 = scmp.eq.s32.totalorder %s38, 0
      %p273 = por %p271, %p272
      %p274 = scmp.ne.s32.totalorder %s260, %s261
      %p275 = scmp.eq.s32.totalorder %s39, 1
      %p276 = por %p274, %p275
      %p278 = scmp.ne.s32.totalorder %s261, %s277
      %p279 = scmp.eq.s32.totalorder %s39, 0
      %p280 = por %p278, %p279
      %s281 = ssub.s32 %s33, %s40
      %p282 = scmp.eq.s32.totalorder %s281, 0
      %s284 = sadd.s32 %s283, 1
      %s285 = scalar_select %p282, %s283, %s284
      %p288 = pneg %p282
      %p289 = scmp.eq.s32.totalorder %s33, 1
      %p290 = por %p288, %p289
      %p291 = scmp.ne.s32.totalorder %s283, %s286
      %p292 = scmp.eq.s32.totalorder %s33, 0
      %p293 = por %p291, %p292
      %p294 = scmp.ne.s32.totalorder %s283, %s286
      %p295 = scmp.eq.s32.totalorder %s38, 1
      %p296 = por %p294, %p295
      %p297 = scmp.ne.s32.totalorder %s286, %s287
      %p298 = scmp.eq.s32.totalorder %s38, 0
      %p299 = por %p297, %p298
      %p300 = scmp.ne.s32.totalorder %s286, %s287
      %p301 = scmp.eq.s32.totalorder %s39, 1
      %p302 = por %p300, %p301
      %p304 = scmp.ne.s32.totalorder %s287, %s303
      %p305 = scmp.eq.s32.totalorder %s39, 0
      %p306 = por %p304, %p305
      %p307 = scmp.le.s32.totalorder 1, %s33
      %p308 = scmp.lt.s32.totalorder %s33, 3
      %p309 = pnand %p307, %p308
      %p310 = pneg %p309
      // Predicated region
      $region9: #{tpu_custom_call.1} parent=5 // pred_check
        _
      $region10: #{tpu_custom_call.1} parent=5 // pred_check_branch
        %312 = sbr.rel (%p309) target = $region12
      $region11: #{tpu_custom_call.1} parent=5 // pred_region
        %s313 = ssub.s32 %s33, 1
        // Predicated region
        $region13: #{tpu_custom_call.1} parent=11 // pred_check
          %p314 = pneg %p80
        $region14: #{tpu_custom_call.1} parent=11 // pred_check_branch
          %316 = sbr.rel (%p314) target = $region16
        $region15: #{tpu_custom_call.1} parent=11 // pred_region
          %s318 = ssub.s32 2560, 2560
          %319 = vsyncadd [#allocation6], %s318
          %s320 = sshll.u32 [#allocation5], 4
          %s321 = int_to_ptr.vmem [resolvable:$true] %s320
          %326 = dma.hbm_to_vmem [thread:$0]  %s1, 2560, %s321, [#allocation6], 128, 128, 8
        $region16: #{tpu_custom_call.1} parent=11 // pred_fallthru
          _
        // Predicated region
        $region17: #{tpu_custom_call.1} parent=11 // pred_check
          %p327 = pneg %p101
        $region18: #{tpu_custom_call.1} parent=11 // pred_check_branch
          %329 = sbr.rel (%p327) target = $region20
        $region19: #{tpu_custom_call.1} parent=11 // pred_region
          %s331 = ssub.s32 2560, 2560
          %332 = vsyncadd [#allocation6], %s331
          %s333 = sshll.u32 [#allocation7], 4
          %s334 = int_to_ptr.vmem [resolvable:$true] %s333
          %339 = dma.hbm_to_vmem [thread:$0]  %s2, 2560, %s334, [#allocation6], 128, 128, 8
        $region20: #{tpu_custom_call.1} parent=11 // pred_fallthru
          _
        // Predicated region
        $region21: #{tpu_custom_call.1} parent=11 // pred_check
          %p340 = pneg %p122
        $region22: #{tpu_custom_call.1} parent=11 // pred_check_branch
          %342 = sbr.rel (%p340) target = $region24
        $region23: #{tpu_custom_call.1} parent=11 // pred_region
          _
        $region24: #{tpu_custom_call.1} parent=11 // pred_fallthru
          _
        // Predicated region
        $region25: #{tpu_custom_call.1} parent=11 // pred_check
          %p343 = pneg %p143
        $region26: #{tpu_custom_call.1} parent=11 // pred_check_branch
          %345 = sbr.rel (%p343) target = $region28
        $region27: #{tpu_custom_call.1} parent=11 // pred_region
          _
        $region28: #{tpu_custom_call.1} parent=11 // pred_fallthru
          _
      $region12: #{tpu_custom_call.1} parent=5 // pred_fallthru
        _
      %p346 = scmp.lt.s32.totalorder %s33, 2
      // Predicated region
      $region29: #{tpu_custom_call.1} parent=5 // pred_check
        %p347 = pneg %p346
      $region30: #{tpu_custom_call.1} parent=5 // pred_check_branch
        %349 = sbr.rel (%p347) target = $region32
      $region31: #{tpu_custom_call.1} parent=5 // pred_region
        // Predicated region
        $region33: #{tpu_custom_call.1} parent=31 // pred_check
          %p350 = pneg %p53
        $region34: #{tpu_custom_call.1} parent=31 // pred_check_branch
          %352 = sbr.rel (%p350) target = $region36
        $region35: #{tpu_custom_call.1} parent=31 // pred_region
          %s353 = sand.u32 %s43, 1
          %s354 = scalar_lea.sflag [#allocation3], %s353
          %s355 = sand.u32 %s43, 1
          %s356 = smul.addr %s355, 32
          %s357 = scalar_lea.vmem [#allocation2], %s356
          %s359 = ssub.s32 512, 512
          %360 = vsyncadd %s354, %s359
          %s361 = smul.addr %s33, 4
          %s362 = smul.addr %s361, 128
          %s363 = scalar_lea.hbm %s0, %s362
          %s364 = sshll.u32 %s357, 4
          %s365 = int_to_ptr.vmem [resolvable:$true] %s364
          %370 = dma.hbm_to_vmem [thread:$0]  %s363, 512, %s365, %s354, 128, 128, 8
        $region36: #{tpu_custom_call.1} parent=31 // pred_fallthru
          _
      $region32: #{tpu_custom_call.1} parent=5 // pred_fallthru
        _
      %p371 = scmp.le.s32.totalorder 1, %s33
      %p372 = scmp.lt.s32.totalorder %s33, 3
      %p373 = pnand %p371, %p372
      %p374 = pneg %p373
      // Predicated region
      $region37: #{tpu_custom_call.1} parent=5 // pred_check
        _
      $region38: #{tpu_custom_call.1} parent=5 // pred_check_branch
        %376 = sbr.rel (%p373) target = $region40
      $region39: #{tpu_custom_call.1} parent=5 // pred_region
        %s377 = ssub.s32 %s33, 1
        %s378 = sand.u32 %s46, 1
        %s379 = scalar_lea.sflag [#allocation3], %s378
        %s380 = sand.u32 %s46, 1
        %s381 = smul.addr %s380, 32
        %s382 = scalar_lea.vmem [#allocation2], %s381
        // Predicated region
        $region41: #{tpu_custom_call.1} parent=39 // pred_check
          %p383 = pneg %p59
        $region42: #{tpu_custom_call.1} parent=39 // pred_check_branch
          %385 = sbr.rel (%p383) target = $region44
        $region43: #{tpu_custom_call.1} parent=39 // pred_region
          %386 = dma.done %s379, 512
        $region44: #{tpu_custom_call.1} parent=39 // pred_fallthru
          _
        // Predicated region
        $region45: #{tpu_custom_call.1} parent=39 // pred_check
          %p387 = pneg %p80
        $region46: #{tpu_custom_call.1} parent=39 // pred_check_branch
          %389 = sbr.rel (%p387) target = $region48
        $region47: #{tpu_custom_call.1} parent=39 // pred_region
          %390 = dma.done [#allocation6], 2560
        $region48: #{tpu_custom_call.1} parent=39 // pred_fallthru
          _
        // Predicated region
        $region49: #{tpu_custom_call.1} parent=39 // pred_check
          %p391 = pneg %p101
        $region50: #{tpu_custom_call.1} parent=39 // pred_check_branch
          %393 = sbr.rel (%p391) target = $region52
        $region51: #{tpu_custom_call.1} parent=39 // pred_region
          %394 = dma.done [#allocation6], 2560
        $region52: #{tpu_custom_call.1} parent=39 // pred_fallthru
          _
        %s395 = sand.u32 %s46, 1
        %s396 = scalar_lea.sflag [#allocation3], %s395
        %s397 = sand.u32 %s46, 1
        %s398 = smul.addr %s397, 32
        %s399 = scalar_lea.vmem [#allocation2], %s398
        %p400 = pneg %p59
        %p401 = pneg %p56
        %p402 = pneg %p80
        %p403 = pneg %p77
        %p404 = pneg %p101
        %p405 = pneg %p98
        %p406 = pneg %p122
        %p407 = pneg %p119
        %p408 = pneg %p143
        %p409 = pneg %p140
        %p410 = pneg %p169
        %p411 = pneg %p166
        %s412 = sand.u32 %s156, 1
        %s413 = scalar_lea.sflag [#allocation4], %s412
        %s414 = sand.u32 %s156, 1
        %s415 = smul.addr %s414, 32
        %s416 = scalar_lea.vmem [#allocation8], %s415
        %p417 = pneg %p195
        %p418 = pneg %p192
        %s419 = sand.u32 %s38, 1
        %s420 = scalar_lea.sflag [#allocation10], %s419
        %s421 = sand.u32 %s182, 1
        %s422 = smul.addr %s421, 32
        %s423 = scalar_lea.vmem [#allocation9], %s422
        %p424 = pneg %p221
        %p425 = pneg %p218
        %s426 = sand.u32 %s38, 1
        %s427 = scalar_lea.sflag [#allocation10], %s426
        %s428 = sand.u32 %s208, 1
        %s429 = smul.addr %s428, 32
        %s430 = scalar_lea.vmem [#allocation11], %s429
        %p431 = pneg %p247
        %p432 = pneg %p244
        %s433 = sand.u32 %s38, 1
        %s434 = scalar_lea.sflag [#allocation13], %s433
        %s435 = sand.u32 %s234, 1
        %s436 = smul.addr %s435, 32
        %s437 = scalar_lea.vmem [#allocation12], %s436
        %p438 = pneg %p273
        %p439 = pneg %p270
        %s440 = sand.u32 %s38, 1
        %s441 = scalar_lea.sflag [#allocation13], %s440
        %s442 = sand.u32 %s260, 1
        %s443 = smul.addr %s442, 32
        %s444 = scalar_lea.vmem [#allocation14], %s443
        %p445 = pneg %p299
        %p446 = pneg %p296
        %s447 = sand.u32 %s286, 1
        %s448 = scalar_lea.sflag [#allocation16], %s447
        %s449 = sand.u32 %s286, 1
        %s450 = smul.addr %s449, 16
        %s451 = scalar_lea.vmem [#allocation15], %s450
        %v452 = vld [vmem:[%s382] sm:$0xff]
        %v453 = vld [vmem:[%s382 + $0x8] sm:$0xff]
        %v454 = vld [vmem:[%s382 + $0x10] sm:$0xff]
        %v455 = vld [vmem:[%s382 + $0x18] sm:$0xff]
        %v456 = vld [vmem:[#allocation5] sm:$0xff]
        %v457 = vld [vmem:[#allocation5 + $0x8] sm:$0xff]
        %v458 = vld [vmem:[#allocation5 + $0x10] sm:$0xff]
        %v459 = vld [vmem:[#allocation5 + $0x18] sm:$0xff]
        %vm460 = vcmask 261120
        %v462 = vsel %vm460, %v456, 0
        %v465 = vsel %vm460, %v457, 0
        %v468 = vsel %vm460, %v458, 0
        %v471 = vsel %vm460, %v459, 0
        %473 = vmatprep.subr.mxu0 0.0
        %474 = vmatpush1.msra.mxu0 %v452
        %475 = vmatprep.subr.mxu0 0.0
        %476 = vmatpush1.msra.mxu0 %v453
        %477 = vmatprep.subr.mxu0 0.0
        %478 = vmatpush1.msra.mxu0 %v454
        %479 = vmatprep.subr.mxu0 0.0
        %480 = vmatpush1.msra.mxu0 %v455
        %481 = vmatprep.subr.mxu0 0.0
        %482 = vmatpush1.msra.mxu0 0.0
        %483 = vmatprep.subr.mxu0 0.0
        %484 = vmatpush1.msra.mxu0 0.0
        %485 = vmatprep.subr.mxu0 0.0
        %486 = vmatpush1.msra.mxu0 0.0
        %487 = vmatprep.subr.mxu0 0.0
        %488 = vmatpush1.msra.mxu0 0.0
        %489 = vmatprep.subr.mxu0 0.0
        %490 = vmatpush1.msra.mxu0 0.0
        %491 = vmatprep.subr.mxu0 0.0
        %492 = vmatpush1.msra.mxu0 0.0
        %493 = vmatprep.subr.mxu0 0.0
        %494 = vmatpush1.msra.mxu0 0.0
        %495 = vmatprep.subr.mxu0 0.0
        %496 = vmatpush1.msra.mxu0 0.0
        %497 = vmatprep.subr.mxu0 0.0
        %498 = vmatpush1.msra.mxu0 0.0
        %499 = vmatprep.subr.mxu0 0.0
        %500 = vmatpush1.msra.mxu0 0.0
        %501 = vmatprep.subr.mxu0 0.0
        %502 = vmatpush1.msra.mxu0 0.0
        %503 = vmatprep.subr.mxu0 0.0
        %504 = vmatpush1.msra.mxu0 0.0
        %505 = vmatprep.subr.mxu0 0.0
        %506 = vmatpush1.msra.mxu0 0.0
        %507 = vmatprep.subr.mxu0 0.0
        %508 = vmatpush1.msra.mxu0 0.0
        %509 = vmatprep.subr.mxu0 0.0
        %510 = vmatpush1.msra.mxu0 0.0
        %511 = vmatprep.subr.mxu0 0.0
        %512 = vmatpush1.msra.mxu0 0.0
        %513 = vmatprep.subr.mxu0 0.0
        %514 = vmatpush1.msra.mxu0 0.0
        %515 = vmatprep.subr.mxu0 0.0
        %516 = vmatpush1.msra.mxu0 0.0
        %517 = vmatprep.subr.mxu0 0.0
        %518 = vmatpush1.msra.mxu0 0.0
        %519 = vmatprep.subr.mxu0 0.0
        %520 = vmatpush1.msra.mxu0 0.0
        %521 = vmatprep.subr.mxu0 0.0
        %522 = vmatpush1.msra.mxu0 0.0
        %523 = vmatprep.subr.mxu0 0.0
        %524 = vmatpush1.msra.mxu0 0.0
        %525 = vmatprep.subr.mxu0 0.0
        %526 = vmatpush1.msra.mxu0 0.0
        %527 = vmatprep.subr.mxu0 0.0
        %528 = vmatpush1.msra.mxu0 0.0
        %529 = vmatprep.subr.mxu0 0.0
        %530 = vmatpush1.msra.mxu0 0.0
        %531 = vmatprep.subr.mxu0 0.0
        %532 = vmatpush1.msra.mxu0 0.0
        %533 = vmatprep.subr.mxu0 0.0
        %534 = vmatpush1.msra.mxu0 0.0
        %535 = vmatprep.subr.mxu0 0.0
        %536 = vmatpush1.msra.mxu0 0.0
        %537 = vmatprep.mubr.f32.mxu0 0.0
        %538 = vmatmul.mubr.f32.gmra.mrb[0].mxu0 %v462
        %v539 = vpop.f32.mrb[0].mxu0
        %v540 = vadd.f32 0.0, %v539
        %v541 = vpop.f32.mrb[0].mxu0
        %542 = vmatprep.mubr.f32.mxu0 0.0
        %543 = vmatmul.mubr.f32.gmra.mrb[0].mxu0 %v465
        %v544 = vpop.f32.mrb[0].mxu0
        %v545 = vadd.f32 0.0, %v544
        %v546 = vpop.f32.mrb[0].mxu0
        %547 = vmatprep.mubr.f32.mxu0 0.0
        %548 = vmatmul.mubr.f32.gmra.mrb[0].mxu0 %v468
        %v549 = vpop.f32.mrb[0].mxu0
        %v550 = vadd.f32 0.0, %v549
        %v551 = vpop.f32.mrb[0].mxu0
        %552 = vmatprep.mubr.f32.mxu0 0.0
        %553 = vmatmul.mubr.f32.gmra.mrb[0].mxu0 %v471
        %v554 = vpop.f32.mrb[0].mxu0
        %v555 = vadd.f32 0.0, %v554
        %v556 = vpop.f32.mrb[0].mxu0
        %557 = vdwg.mxu0
        %v558 = vld [vmem:[#allocation7] sm:$0xff]
        %v559 = vld [vmem:[#allocation7 + $0x8] sm:$0xff]
        %v560 = vld [vmem:[#allocation7 + $0x10] sm:$0xff]
        %v561 = vld [vmem:[#allocation7 + $0x18] sm:$0xff]
        %v563 = vsel %vm460, %v540, 0
        %v566 = vsel %vm460, %v545, 0
        %v569 = vsel %vm460, %v550, 0
        %v572 = vsel %vm460, %v555, 0
        %574 = vmatprep.subr.mxu0 0.0
        %575 = vmatpush1.msra.mxu0 %v558
        %576 = vmatprep.subr.mxu0 0.0
        %577 = vmatpush1.msra.mxu0 %v559
        %578 = vmatprep.subr.mxu0 0.0
        %579 = vmatpush1.msra.mxu0 %v560
        %580 = vmatprep.subr.mxu0 0.0
        %581 = vmatpush1.msra.mxu0 %v561
        %582 = vmatprep.subr.mxu0 0.0
        %583 = vmatpush1.msra.mxu0 0.0
        %584 = vmatprep.subr.mxu0 0.0
        %585 = vmatpush1.msra.mxu0 0.0
        %586 = vmatprep.subr.mxu0 0.0
        %587 = vmatpush1.msra.mxu0 0.0
        %588 = vmatprep.subr.mxu0 0.0
        %589 = vmatpush1.msra.mxu0 0.0
        %590 = vmatprep.subr.mxu0 0.0
        %591 = vmatpush1.msra.mxu0 0.0
        %592 = vmatprep.subr.mxu0 0.0
        %593 = vmatpush1.msra.mxu0 0.0
        %594 = vmatprep.subr.mxu0 0.0
        %595 = vmatpush1.msra.mxu0 0.0
        %596 = vmatprep.subr.mxu0 0.0
        %597 = vmatpush1.msra.mxu0 0.0
        %598 = vmatprep.subr.mxu0 0.0
        %599 = vmatpush1.msra.mxu0 0.0
        %600 = vmatprep.subr.mxu0 0.0
        %601 = vmatpush1.msra.mxu0 0.0
        %602 = vmatprep.subr.mxu0 0.0
        %603 = vmatpush1.msra.mxu0 0.0
        %604 = vmatprep.subr.mxu0 0.0
        %605 = vmatpush1.msra.mxu0 0.0
        %606 = vmatprep.subr.mxu0 0.0
        %607 = vmatpush1.msra.mxu0 0.0
        %608 = vmatprep.subr.mxu0 0.0
        %609 = vmatpush1.msra.mxu0 0.0
        %610 = vmatprep.subr.mxu0 0.0
        %611 = vmatpush1.msra.mxu0 0.0
        %612 = vmatprep.subr.mxu0 0.0
        %613 = vmatpush1.msra.mxu0 0.0
        %614 = vmatprep.subr.mxu0 0.0
        %615 = vmatpush1.msra.mxu0 0.0
        %616 = vmatprep.subr.mxu0 0.0
        %617 = vmatpush1.msra.mxu0 0.0
        %618 = vmatprep.subr.mxu0 0.0
        %619 = vmatpush1.msra.mxu0 0.0
        %620 = vmatprep.subr.mxu0 0.0
        %621 = vmatpush1.msra.mxu0 0.0
        %622 = vmatprep.subr.mxu0 0.0
        %623 = vmatpush1.msra.mxu0 0.0
        %624 = vmatprep.subr.mxu0 0.0
        %625 = vmatpush1.msra.mxu0 0.0
        %626 = vmatprep.subr.mxu0 0.0
        %627 = vmatpush1.msra.mxu0 0.0
        %628 = vmatprep.subr.mxu0 0.0
        %629 = vmatpush1.msra.mxu0 0.0
        %630 = vmatprep.subr.mxu0 0.0
        %631 = vmatpush1.msra.mxu0 0.0
        %632 = vmatprep.subr.mxu0 0.0
        %633 = vmatpush1.msra.mxu0 0.0
        %634 = vmatprep.subr.mxu0 0.0
        %635 = vmatpush1.msra.mxu0 0.0
        %636 = vmatprep.subr.mxu0 0.0
        %637 = vmatpush1.msra.mxu0 0.0
        %638 = vmatprep.mubr.f32.mxu0 0.0
        %639 = vmatmul.mubr.f32.gmra.mrb[0].mxu0 %v563
        %v640 = vpop.f32.mrb[0].mxu0
        %v641 = vadd.f32 0.0, %v640
        %v642 = vpop.f32.mrb[0].mxu0
        %643 = vmatprep.mubr.f32.mxu0 0.0
        %644 = vmatmul.mubr.f32.gmra.mrb[0].mxu0 %v566
        %v645 = vpop.f32.mrb[0].mxu0
        %v646 = vadd.f32 0.0, %v645
        %v647 = vpop.f32.mrb[0].mxu0
        %648 = vmatprep.mubr.f32.mxu0 0.0
        %649 = vmatmul.mubr.f32.gmra.mrb[0].mxu0 %v569
        %v650 = vpop.f32.mrb[0].mxu0
        %v651 = vadd.f32 0.0, %v650
        %v652 = vpop.f32.mrb[0].mxu0
        %653 = vmatprep.mubr.f32.mxu0 0.0
        %654 = vmatmul.mubr.f32.gmra.mrb[0].mxu0 %v572
        %v655 = vpop.f32.mrb[0].mxu0
        %v656 = vadd.f32 0.0, %v655
        %v657 = vpop.f32.mrb[0].mxu0
        %658 = vdwg.mxu0
        %659 = vst.msk [vmem:[%s416] sm:$0xff] %vm460, %v641
        %660 = vst.msk [vmem:[%s416 + $0x8] sm:$0xff] %vm460, %v646
        %661 = vst.msk [vmem:[%s416 + $0x10] sm:$0xff] %vm460, %v651
        %662 = vst.msk [vmem:[%s416 + $0x18] sm:$0xff] %vm460, %v656
        %s663 = scalar_lea.vmem [#allocation5], 32
        %v664 = vld [vmem:[%s663] sm:$0xff]
        %v665 = vld [vmem:[%s663 + $0x8] sm:$0xff]
        %v666 = vld [vmem:[%s663 + $0x10] sm:$0xff]
        %v667 = vld [vmem:[%s663 + $0x18] sm:$0xff]
        %v669 = vsel %vm460, %v664, 0
        %v672 = vsel %vm460, %v665, 0
        %v675 = vsel %vm460, %v666, 0
        %v678 = vsel %vm460, %v667, 0
        %680 = vmatprep.subr.mxu0 0.0
        %681 = vmatpush1.msra.mxu0 %v641
        %682 = vmatprep.subr.mxu0 0.0
        %683 = vmatpush1.msra.mxu0 %v646
        %684 = vmatprep.subr.mxu0 0.0
        %685 = vmatpush1.msra.mxu0 %v651
        %686 = vmatprep.subr.mxu0 0.0
        %687 = vmatpush1.msra.mxu0 %v656
        %688 = vmatprep.subr.mxu0 0.0
        %689 = vmatpush1.msra.mxu0 0.0
        %690 = vmatprep.subr.mxu0 0.0
        %691 = vmatpush1.msra.mxu0 0.0
        %692 = vmatprep.subr.mxu0 0.0
        %693 = vmatpush1.msra.mxu0 0.0
        %694 = vmatprep.subr.mxu0 0.0
        %695 = vmatpush1.msra.mxu0 0.0
        %696 = vmatprep.subr.mxu0 0.0
        %697 = vmatpush1.msra.mxu0 0.0
        %698 = vmatprep.subr.mxu0 0.0
        %699 = vmatpush1.msra.mxu0 0.0
        %700 = vmatprep.subr.mxu0 0.0
        %701 = vmatpush1.msra.mxu0 0.0
        %702 = vmatprep.subr.mxu0 0.0
        %703 = vmatpush1.msra.mxu0 0.0
        %704 = vmatprep.subr.mxu0 0.0
        %705 = vmatpush1.msra.mxu0 0.0
        %706 = vmatprep.subr.mxu0 0.0
        %707 = vmatpush1.msra.mxu0 0.0
        %708 = vmatprep.subr.mxu0 0.0
        %709 = vmatpush1.msra.mxu0 0.0
        %710 = vmatprep.subr.mxu0 0.0
        %711 = vmatpush1.msra.mxu0 0.0
        %712 = vmatprep.subr.mxu0 0.0
        %713 = vmatpush1.msra.mxu0 0.0
        %714 = vmatprep.subr.mxu0 0.0
        %715 = vmatpush1.msra.mxu0 0.0
        %716 = vmatprep.subr.mxu0 0.0
        %717 = vmatpush1.msra.mxu0 0.0
        %718 = vmatprep.subr.mxu0 0.0
        %719 = vmatpush1.msra.mxu0 0.0
        %720 = vmatprep.subr.mxu0 0.0
        %721 = vmatpush1.msra.mxu0 0.0
        %722 = vmatprep.subr.mxu0 0.0
        %723 = vmatpush1.msra.mxu0 0.0
        %724 = vmatprep.subr.mxu0 0.0
        %725 = vmatpush1.msra.mxu0 0.0
        %726 = vmatprep.subr.mxu0 0.0
        %727 = vmatpush1.msra.mxu0 0.0
        %728 = vmatprep.subr.mxu0 0.0
        %729 = vmatpush1.msra.mxu0 0.0
        %730 = vmatprep.subr.mxu0 0.0
        %731 = vmatpush1.msra.mxu0 0.0
        %732 = vmatprep.subr.mxu0 0.0
        %733 = vmatpush1.msra.mxu0 0.0
        %734 = vmatprep.subr.mxu0 0.0
        %735 = vmatpush1.msra.mxu0 0.0
        %736 = vmatprep.subr.mxu0 0.0
        %737 = vmatpush1.msra.mxu0 0.0
        %738 = vmatprep.subr.mxu0 0.0
        %739 = vmatpush1.msra.mxu0 0.0
        %740 = vmatprep.subr.mxu0 0.0
        %741 = vmatpush1.msra.mxu0 0.0
        %742 = vmatprep.subr.mxu0 0.0
        %743 = vmatpush1.msra.mxu0 0.0
        %744 = vmatprep.mubr.f32.mxu0 0.0
        %745 = vmatmul.mubr.f32.gmra.mrb[0].mxu0 %v669
        %v746 = vpop.f32.mrb[0].mxu0
        %v747 = vadd.f32 0.0, %v746
        %v748 = vpop.f32.mrb[0].mxu0
        %749 = vmatprep.mubr.f32.mxu0 0.0
        %750 = vmatmul.mubr.f32.gmra.mrb[0].mxu0 %v672
        %v751 = vpop.f32.mrb[0].mxu0
        %v752 = vadd.f32 0.0, %v751
        %v753 = vpop.f32.mrb[0].mxu0
        %754 = vmatprep.mubr.f32.mxu0 0.0
        %755 = vmatmul.mubr.f32.gmra.mrb[0].mxu0 %v675
        %v756 = vpop.f32.mrb[0].mxu0
        %v757 = vadd.f32 0.0, %v756
        %v758 = vpop.f32.mrb[0].mxu0
        %759 = vmatprep.mubr.f32.mxu0 0.0
        %760 = vmatmul.mubr.f32.gmra.mrb[0].mxu0 %v678
        %v761 = vpop.f32.mrb[0].mxu0
        %v762 = vadd.f32 0.0, %v761
        %v763 = vpop.f32.mrb[0].mxu0
        %764 = vdwg.mxu0
        %s765 = scalar_lea.vmem [#allocation7], 32
        %v766 = vld [vmem:[%s765] sm:$0xff]
        %v767 = vld [vmem:[%s765 + $0x8] sm:$0xff]
        %v768 = vld [vmem:[%s765 + $0x10] sm:$0xff]
        %v769 = vld [vmem:[%s765 + $0x18] sm:$0xff]
        %v771 = vsel %vm460, %v747, 0
        %v774 = vsel %vm460, %v752, 0
        %v777 = vsel %vm460, %v757, 0
        %v780 = vsel %vm460, %v762, 0
        %782 = vmatprep.subr.mxu0 0.0
        %783 = vmatpush1.msra.mxu0 %v766
        %784 = vmatprep.subr.mxu0 0.0
        %785 = vmatpush1.msra.mxu0 %v767
        %786 = vmatprep.subr.mxu0 0.0
        %787 = vmatpush1.msra.mxu0 %v768
        %788 = vmatprep.subr.mxu0 0.0
        %789 = vmatpush1.msra.mxu0 %v769
        %790 = vmatprep.subr.mxu0 0.0
        %791 = vmatpush1.msra.mxu0 0.0
        %792 = vmatprep.subr.mxu0 0.0
        %793 = vmatpush1.msra.mxu0 0.0
        %794 = vmatprep.subr.mxu0 0.0
        %795 = vmatpush1.msra.mxu0 0.0
        %796 = vmatprep.subr.mxu0 0.0
        %797 = vmatpush1.msra.mxu0 0.0
        %798 = vmatprep.subr.mxu0 0.0
        %799 = vmatpush1.msra.mxu0 0.0
        %800 = vmatprep.subr.mxu0 0.0
        %801 = vmatpush1.msra.mxu0 0.0
        %802 = vmatprep.subr.mxu0 0.0
        %803 = vmatpush1.msra.mxu0 0.0
        %804 = vmatprep.subr.mxu0 0.0
        %805 = vmatpush1.msra.mxu0 0.0
        %806 = vmatprep.subr.mxu0 0.0
        %807 = vmatpush1.msra.mxu0 0.0
        %808 = vmatprep.subr.mxu0 0.0
        %809 = vmatpush1.msra.mxu0 0.0
        %810 = vmatprep.subr.mxu0 0.0
        %811 = vmatpush1.msra.mxu0 0.0
        %812 = vmatprep.subr.mxu0 0.0
        %813 = vmatpush1.msra.mxu0 0.0
        %814 = vmatprep.subr.mxu0 0.0
        %815 = vmatpush1.msra.mxu0 0.0
        %816 = vmatprep.subr.mxu0 0.0
        %817 = vmatpush1.msra.mxu0 0.0
        %818 = vmatprep.subr.mxu0 0.0
        %819 = vmatpush1.msra.mxu0 0.0
        %820 = vmatprep.subr.mxu0 0.0
        %821 = vmatpush1.msra.mxu0 0.0
        %822 = vmatprep.subr.mxu0 0.0
        %823 = vmatpush1.msra.mxu0 0.0
        %824 = vmatprep.subr.mxu0 0.0
        %825 = vmatpush1.msra.mxu0 0.0
        %826 = vmatprep.subr.mxu0 0.0
        %827 = vmatpush1.msra.mxu0 0.0
        %828 = vmatprep.subr.mxu0 0.0
        %829 = vmatpush1.msra.mxu0 0.0
        %830 = vmatprep.subr.mxu0 0.0
        %831 = vmatpush1.msra.mxu0 0.0
        %832 = vmatprep.subr.mxu0 0.0
        %833 = vmatpush1.msra.mxu0 0.0
        %834 = vmatprep.subr.mxu0 0.0
        %835 = vmatpush1.msra.mxu0 0.0
        %836 = vmatprep.subr.mxu0 0.0
        %837 = vmatpush1.msra.mxu0 0.0
        %838 = vmatprep.subr.mxu0 0.0
        %839 = vmatpush1.msra.mxu0 0.0
        %840 = vmatprep.subr.mxu0 0.0
        %841 = vmatpush1.msra.mxu0 0.0
        %842 = vmatprep.subr.mxu0 0.0
        %843 = vmatpush1.msra.mxu0 0.0
        %844 = vmatprep.subr.mxu0 0.0
        %845 = vmatpush1.msra.mxu0 0.0
        %846 = vmatprep.mubr.f32.mxu0 0.0
        %847 = vmatmul.mubr.f32.gmra.mrb[0].mxu0 %v771
        %v848 = vpop.f32.mrb[0].mxu0
        %v849 = vadd.f32 0.0, %v848
        %v850 = vpop.f32.mrb[0].mxu0
        %851 = vmatprep.mubr.f32.mxu0 0.0
        %852 = vmatmul.mubr.f32.gmra.mrb[0].mxu0 %v774
        %v853 = vpop.f32.mrb[0].mxu0
        %v854 = vadd.f32 0.0, %v853
        %v855 = vpop.f32.mrb[0].mxu0
        %856 = vmatprep.mubr.f32.mxu0 0.0
        %857 = vmatmul.mubr.f32.gmra.mrb[0].mxu0 %v777
        %v858 = vpop.f32.mrb[0].mxu0
        %v859 = vadd.f32 0.0, %v858
        %v860 = vpop.f32.mrb[0].mxu0
        %861 = vmatprep.mubr.f32.mxu0 0.0
        %862 = vmatmul.mubr.f32.gmra.mrb[0].mxu0 %v780
        %v863 = vpop.f32.mrb[0].mxu0
        %v864 = vadd.f32 0.0, %v863
        %v865 = vpop.f32.mrb[0].mxu0
        %866 = vdwg.mxu0
        %867 = vst.msk [vmem:[%s423] sm:$0xff] %vm460, %v849
        %868 = vst.msk [vmem:[%s423 + $0x8] sm:$0xff] %vm460, %v854
        %869 = vst.msk [vmem:[%s423 + $0x10] sm:$0xff] %vm460, %v859
        %870 = vst.msk [vmem:[%s423 + $0x18] sm:$0xff] %vm460, %v864
        %s871 = scalar_lea.vmem [#allocation5], 64
        %v872 = vld [vmem:[%s871] sm:$0xff]
        %v873 = vld [vmem:[%s871 + $0x8] sm:$0xff]
        %v874 = vld [vmem:[%s871 + $0x10] sm:$0xff]
        %v875 = vld [vmem:[%s871 + $0x18] sm:$0xff]
        %v877 = vsel %vm460, %v872, 0
        %v880 = vsel %vm460, %v873, 0
        %v883 = vsel %vm460, %v874, 0
        %v886 = vsel %vm460, %v875, 0
        %888 = vmatprep.subr.mxu0 0.0
        %889 = vmatpush1.msra.mxu0 %v849
        %890 = vmatprep.subr.mxu0 0.0
        %891 = vmatpush1.msra.mxu0 %v854
        %892 = vmatprep.subr.mxu0 0.0
        %893 = vmatpush1.msra.mxu0 %v859
        %894 = vmatprep.subr.mxu0 0.0
        %895 = vmatpush1.msra.mxu0 %v864
        %896 = vmatprep.subr.mxu0 0.0
        %897 = vmatpush1.msra.mxu0 0.0
        %898 = vmatprep.subr.mxu0 0.0
        %899 = vmatpush1.msra.mxu0 0.0
        %900 = vmatprep.subr.mxu0 0.0
        %901 = vmatpush1.msra.mxu0 0.0
        %902 = vmatprep.subr.mxu0 0.0
        %903 = vmatpush1.msra.mxu0 0.0
        %904 = vmatprep.subr.mxu0 0.0
        %905 = vmatpush1.msra.mxu0 0.0
        %906 = vmatprep.subr.mxu0 0.0
        %907 = vmatpush1.msra.mxu0 0.0
        %908 = vmatprep.subr.mxu0 0.0
        %909 = vmatpush1.msra.mxu0 0.0
        %910 = vmatprep.subr.mxu0 0.0
        %911 = vmatpush1.msra.mxu0 0.0
        %912 = vmatprep.subr.mxu0 0.0
        %913 = vmatpush1.msra.mxu0 0.0
        %914 = vmatprep.subr.mxu0 0.0
        %915 = vmatpush1.msra.mxu0 0.0
        %916 = vmatprep.subr.mxu0 0.0
        %917 = vmatpush1.msra.mxu0 0.0
        %918 = vmatprep.subr.mxu0 0.0
        %919 = vmatpush1.msra.mxu0 0.0
        %920 = vmatprep.subr.mxu0 0.0
        %921 = vmatpush1.msra.mxu0 0.0
        %922 = vmatprep.subr.mxu0 0.0
        %923 = vmatpush1.msra.mxu0 0.0
        %924 = vmatprep.subr.mxu0 0.0
        %925 = vmatpush1.msra.mxu0 0.0
        %926 = vmatprep.subr.mxu0 0.0
        %927 = vmatpush1.msra.mxu0 0.0
        %928 = vmatprep.subr.mxu0 0.0
        %929 = vmatpush1.msra.mxu0 0.0
        %930 = vmatprep.subr.mxu0 0.0
        %931 = vmatpush1.msra.mxu0 0.0
        %932 = vmatprep.subr.mxu0 0.0
        %933 = vmatpush1.msra.mxu0 0.0
        %934 = vmatprep.subr.mxu0 0.0
        %935 = vmatpush1.msra.mxu0 0.0
        %936 = vmatprep.subr.mxu0 0.0
        %937 = vmatpush1.msra.mxu0 0.0
        %938 = vmatprep.subr.mxu0 0.0
        %939 = vmatpush1.msra.mxu0 0.0
        %940 = vmatprep.subr.mxu0 0.0
        %941 = vmatpush1.msra.mxu0 0.0
        %942 = vmatprep.subr.mxu0 0.0
        %943 = vmatpush1.msra.mxu0 0.0
        %944 = vmatprep.subr.mxu0 0.0
        %945 = vmatpush1.msra.mxu0 0.0
        %946 = vmatprep.subr.mxu0 0.0
        %947 = vmatpush1.msra.mxu0 0.0
        %948 = vmatprep.subr.mxu0 0.0
        %949 = vmatpush1.msra.mxu0 0.0
        %950 = vmatprep.subr.mxu0 0.0
        %951 = vmatpush1.msra.mxu0 0.0
        %952 = vmatprep.mubr.f32.mxu0 0.0
        %953 = vmatmul.mubr.f32.gmra.mrb[0].mxu0 %v877
        %v954 = vpop.f32.mrb[0].mxu0
        %v955 = vadd.f32 0.0, %v954
        %v956 = vpop.f32.mrb[0].mxu0
        %957 = vmatprep.mubr.f32.mxu0 0.0
        %958 = vmatmul.mubr.f32.gmra.mrb[0].mxu0 %v880
        %v959 = vpop.f32.mrb[0].mxu0
        %v960 = vadd.f32 0.0, %v959
        %v961 = vpop.f32.mrb[0].mxu0
        %962 = vmatprep.mubr.f32.mxu0 0.0
        %963 = vmatmul.mubr.f32.gmra.mrb[0].mxu0 %v883
        %v964 = vpop.f32.mrb[0].mxu0
        %v965 = vadd.f32 0.0, %v964
        %v966 = vpop.f32.mrb[0].mxu0
        %967 = vmatprep.mubr.f32.mxu0 0.0
        %968 = vmatmul.mubr.f32.gmra.mrb[0].mxu0 %v886
        %v969 = vpop.f32.mrb[0].mxu0
        %v970 = vadd.f32 0.0, %v969
        %v971 = vpop.f32.mrb[0].mxu0
        %972 = vdwg.mxu0
        %s973 = scalar_lea.vmem [#allocation7], 64
        %v974 = vld [vmem:[%s973] sm:$0xff]
        %v975 = vld [vmem:[%s973 + $0x8] sm:$0xff]
        %v976 = vld [vmem:[%s973 + $0x10] sm:$0xff]
        %v977 = vld [vmem:[%s973 + $0x18] sm:$0xff]
        %v979 = vsel %vm460, %v955, 0
        %v982 = vsel %vm460, %v960, 0
        %v985 = vsel %vm460, %v965, 0
        %v988 = vsel %vm460, %v970, 0
        %990 = vmatprep.subr.mxu0 0.0
        %991 = vmatpush1.msra.mxu0 %v974
        %992 = vmatprep.subr.mxu0 0.0
        %993 = vmatpush1.msra.mxu0 %v975
        %994 = vmatprep.subr.mxu0 0.0
        %995 = vmatpush1.msra.mxu0 %v976
        %996 = vmatprep.subr.mxu0 0.0
        %997 = vmatpush1.msra.mxu0 %v977
        %998 = vmatprep.subr.mxu0 0.0
        %999 = vmatpush1.msra.mxu0 0.0
        %1000 = vmatprep.subr.mxu0 0.0
        %1001 = vmatpush1.msra.mxu0 0.0
        %1002 = vmatprep.subr.mxu0 0.0
        %1003 = vmatpush1.msra.mxu0 0.0
        %1004 = vmatprep.subr.mxu0 0.0
        %1005 = vmatpush1.msra.mxu0 0.0
        %1006 = vmatprep.subr.mxu0 0.0
        %1007 = vmatpush1.msra.mxu0 0.0
        %1008 = vmatprep.subr.mxu0 0.0
        %1009 = vmatpush1.msra.mxu0 0.0
        %1010 = vmatprep.subr.mxu0 0.0
        %1011 = vmatpush1.msra.mxu0 0.0
        %1012 = vmatprep.subr.mxu0 0.0
        %1013 = vmatpush1.msra.mxu0 0.0
        %1014 = vmatprep.subr.mxu0 0.0
        %1015 = vmatpush1.msra.mxu0 0.0
        %1016 = vmatprep.subr.mxu0 0.0
        %1017 = vmatpush1.msra.mxu0 0.0
        %1018 = vmatprep.subr.mxu0 0.0
        %1019 = vmatpush1.msra.mxu0 0.0
        %1020 = vmatprep.subr.mxu0 0.0
        %1021 = vmatpush1.msra.mxu0 0.0
        %1022 = vmatprep.subr.mxu0 0.0
        %1023 = vmatpush1.msra.mxu0 0.0
        %1024 = vmatprep.subr.mxu0 0.0
        %1025 = vmatpush1.msra.mxu0 0.0
        %1026 = vmatprep.subr.mxu0 0.0
        %1027 = vmatpush1.msra.mxu0 0.0
        %1028 = vmatprep.subr.mxu0 0.0
        %1029 = vmatpush1.msra.mxu0 0.0
        %1030 = vmatprep.subr.mxu0 0.0
        %1031 = vmatpush1.msra.mxu0 0.0
        %1032 = vmatprep.subr.mxu0 0.0
        %1033 = vmatpush1.msra.mxu0 0.0
        %1034 = vmatprep.subr.mxu0 0.0
        %1035 = vmatpush1.msra.mxu0 0.0
        %1036 = vmatprep.subr.mxu0 0.0
        %1037 = vmatpush1.msra.mxu0 0.0
        %1038 = vmatprep.subr.mxu0 0.0
        %1039 = vmatpush1.msra.mxu0 0.0
        %1040 = vmatprep.subr.mxu0 0.0
        %1041 = vmatpush1.msra.mxu0 0.0
        %1042 = vmatprep.subr.mxu0 0.0
        %1043 = vmatpush1.msra.mxu0 0.0
        %1044 = vmatprep.subr.mxu0 0.0
        %1045 = vmatpush1.msra.mxu0 0.0
        %1046 = vmatprep.subr.mxu0 0.0
        %1047 = vmatpush1.msra.mxu0 0.0
        %1048 = vmatprep.subr.mxu0 0.0
        %1049 = vmatpush1.msra.mxu0 0.0
        %1050 = vmatprep.subr.mxu0 0.0
        %1051 = vmatpush1.msra.mxu0 0.0
        %1052 = vmatprep.subr.mxu0 0.0
        %1053 = vmatpush1.msra.mxu0 0.0
        %1054 = vmatprep.mubr.f32.mxu0 0.0
        %1055 = vmatmul.mubr.f32.gmra.mrb[0].mxu0 %v979
        %v1056 = vpop.f32.mrb[0].mxu0
        %v1057 = vadd.f32 0.0, %v1056
        %v1058 = vpop.f32.mrb[0].mxu0
        %1059 = vmatprep.mubr.f32.mxu0 0.0
        %1060 = vmatmul.mubr.f32.gmra.mrb[0].mxu0 %v982
        %v1061 = vpop.f32.mrb[0].mxu0
        %v1062 = vadd.f32 0.0, %v1061
        %v1063 = vpop.f32.mrb[0].mxu0
        %1064 = vmatprep.mubr.f32.mxu0 0.0
        %1065 = vmatmul.mubr.f32.gmra.mrb[0].mxu0 %v985
        %v1066 = vpop.f32.mrb[0].mxu0
        %v1067 = vadd.f32 0.0, %v1066
        %v1068 = vpop.f32.mrb[0].mxu0
        %1069 = vmatprep.mubr.f32.mxu0 0.0
        %1070 = vmatmul.mubr.f32.gmra.mrb[0].mxu0 %v988
        %v1071 = vpop.f32.mrb[0].mxu0
        %v1072 = vadd.f32 0.0, %v1071
        %v1073 = vpop.f32.mrb[0].mxu0
        %1074 = vdwg.mxu0
        %1075 = vst.msk [vmem:[%s430] sm:$0xff] %vm460, %v1057
        %1076 = vst.msk [vmem:[%s430 + $0x8] sm:$0xff] %vm460, %v1062
        %1077 = vst.msk [vmem:[%s430 + $0x10] sm:$0xff] %vm460, %v1067
        %1078 = vst.msk [vmem:[%s430 + $0x18] sm:$0xff] %vm460, %v1072
        %s1079 = scalar_lea.vmem [#allocation5], 96
        %v1080 = vld [vmem:[%s1079] sm:$0xff]
        %v1081 = vld [vmem:[%s1079 + $0x8] sm:$0xff]
        %v1082 = vld [vmem:[%s1079 + $0x10] sm:$0xff]
        %v1083 = vld [vmem:[%s1079 + $0x18] sm:$0xff]
        %v1085 = vsel %vm460, %v1080, 0
        %v1088 = vsel %vm460, %v1081, 0
        %v1091 = vsel %vm460, %v1082, 0
        %v1094 = vsel %vm460, %v1083, 0
        %1096 = vmatprep.subr.mxu0 0.0
        %1097 = vmatpush1.msra.mxu0 %v1057
        %1098 = vmatprep.subr.mxu0 0.0
        %1099 = vmatpush1.msra.mxu0 %v1062
        %1100 = vmatprep.subr.mxu0 0.0
        %1101 = vmatpush1.msra.mxu0 %v1067
        %1102 = vmatprep.subr.mxu0 0.0
        %1103 = vmatpush1.msra.mxu0 %v1072
        %1104 = vmatprep.subr.mxu0 0.0
        %1105 = vmatpush1.msra.mxu0 0.0
        %1106 = vmatprep.subr.mxu0 0.0
        %1107 = vmatpush1.msra.mxu0 0.0
        %1108 = vmatprep.subr.mxu0 0.0
        %1109 = vmatpush1.msra.mxu0 0.0
        %1110 = vmatprep.subr.mxu0 0.0
        %1111 = vmatpush1.msra.mxu0 0.0
        %1112 = vmatprep.subr.mxu0 0.0
        %1113 = vmatpush1.msra.mxu0 0.0
        %1114 = vmatprep.subr.mxu0 0.0
        %1115 = vmatpush1.msra.mxu0 0.0
        %1116 = vmatprep.subr.mxu0 0.0
        %1117 = vmatpush1.msra.mxu0 0.0
        %1118 = vmatprep.subr.mxu0 0.0
        %1119 = vmatpush1.msra.mxu0 0.0
        %1120 = vmatprep.subr.mxu0 0.0
        %1121 = vmatpush1.msra.mxu0 0.0
        %1122 = vmatprep.subr.mxu0 0.0
        %1123 = vmatpush1.msra.mxu0 0.0
        %1124 = vmatprep.subr.mxu0 0.0
        %1125 = vmatpush1.msra.mxu0 0.0
        %1126 = vmatprep.subr.mxu0 0.0
        %1127 = vmatpush1.msra.mxu0 0.0
        %1128 = vmatprep.subr.mxu0 0.0
        %1129 = vmatpush1.msra.mxu0 0.0
        %1130 = vmatprep.subr.mxu0 0.0
        %1131 = vmatpush1.msra.mxu0 0.0
        %1132 = vmatprep.subr.mxu0 0.0
        %1133 = vmatpush1.msra.mxu0 0.0
        %1134 = vmatprep.subr.mxu0 0.0
        %1135 = vmatpush1.msra.mxu0 0.0
        %1136 = vmatprep.subr.mxu0 0.0
        %1137 = vmatpush1.msra.mxu0 0.0
        %1138 = vmatprep.subr.mxu0 0.0
        %1139 = vmatpush1.msra.mxu0 0.0
        %1140 = vmatprep.subr.mxu0 0.0
        %1141 = vmatpush1.msra.mxu0 0.0
        %1142 = vmatprep.subr.mxu0 0.0
        %1143 = vmatpush1.msra.mxu0 0.0
        %1144 = vmatprep.subr.mxu0 0.0
        %1145 = vmatpush1.msra.mxu0 0.0
        %1146 = vmatprep.subr.mxu0 0.0
        %1147 = vmatpush1.msra.mxu0 0.0
        %1148 = vmatprep.subr.mxu0 0.0
        %1149 = vmatpush1.msra.mxu0 0.0
        %1150 = vmatprep.subr.mxu0 0.0
        %1151 = vmatpush1.msra.mxu0 0.0
        %1152 = vmatprep.subr.mxu0 0.0
        %1153 = vmatpush1.msra.mxu0 0.0
        %1154 = vmatprep.subr.mxu0 0.0
        %1155 = vmatpush1.msra.mxu0 0.0
        %1156 = vmatprep.subr.mxu0 0.0
        %1157 = vmatpush1.msra.mxu0 0.0
        %1158 = vmatprep.subr.mxu0 0.0
        %1159 = vmatpush1.msra.mxu0 0.0
        %1160 = vmatprep.mubr.f32.mxu0 0.0
        %1161 = vmatmul.mubr.f32.gmra.mrb[0].mxu0 %v1085
        %v1162 = vpop.f32.mrb[0].mxu0
        %v1163 = vadd.f32 0.0, %v1162
        %v1164 = vpop.f32.mrb[0].mxu0
        %1165 = vmatprep.mubr.f32.mxu0 0.0
        %1166 = vmatmul.mubr.f32.gmra.mrb[0].mxu0 %v1088
        %v1167 = vpop.f32.mrb[0].mxu0
        %v1168 = vadd.f32 0.0, %v1167
        %v1169 = vpop.f32.mrb[0].mxu0
        %1170 = vmatprep.mubr.f32.mxu0 0.0
        %1171 = vmatmul.mubr.f32.gmra.mrb[0].mxu0 %v1091
        %v1172 = vpop.f32.mrb[0].mxu0
        %v1173 = vadd.f32 0.0, %v1172
        %v1174 = vpop.f32.mrb[0].mxu0
        %1175 = vmatprep.mubr.f32.mxu0 0.0
        %1176 = vmatmul.mubr.f32.gmra.mrb[0].mxu0 %v1094
        %v1177 = vpop.f32.mrb[0].mxu0
        %v1178 = vadd.f32 0.0, %v1177
        %v1179 = vpop.f32.mrb[0].mxu0
        %1180 = vdwg.mxu0
        %s1181 = scalar_lea.vmem [#allocation7], 96
        %v1182 = vld [vmem:[%s1181] sm:$0xff]
        %v1183 = vld [vmem:[%s1181 + $0x8] sm:$0xff]
        %v1184 = vld [vmem:[%s1181 + $0x10] sm:$0xff]
        %v1185 = vld [vmem:[%s1181 + $0x18] sm:$0xff]
        %v1187 = vsel %vm460, %v1163, 0
        %v1190 = vsel %vm460, %v1168, 0
        %v1193 = vsel %vm460, %v1173, 0
        %v1196 = vsel %vm460, %v1178, 0
        %1198 = vmatprep.subr.mxu0 0.0
        %1199 = vmatpush1.msra.mxu0 %v1182
        %1200 = vmatprep.subr.mxu0 0.0
        %1201 = vmatpush1.msra.mxu0 %v1183
        %1202 = vmatprep.subr.mxu0 0.0
        %1203 = vmatpush1.msra.mxu0 %v1184
        %1204 = vmatprep.subr.mxu0 0.0
        %1205 = vmatpush1.msra.mxu0 %v1185
        %1206 = vmatprep.subr.mxu0 0.0
        %1207 = vmatpush1.msra.mxu0 0.0
        %1208 = vmatprep.subr.mxu0 0.0
        %1209 = vmatpush1.msra.mxu0 0.0
        %1210 = vmatprep.subr.mxu0 0.0
        %1211 = vmatpush1.msra.mxu0 0.0
        %1212 = vmatprep.subr.mxu0 0.0
        %1213 = vmatpush1.msra.mxu0 0.0
        %1214 = vmatprep.subr.mxu0 0.0
        %1215 = vmatpush1.msra.mxu0 0.0
        %1216 = vmatprep.subr.mxu0 0.0
        %1217 = vmatpush1.msra.mxu0 0.0
        %1218 = vmatprep.subr.mxu0 0.0
        %1219 = vmatpush1.msra.mxu0 0.0
        %1220 = vmatprep.subr.mxu0 0.0
        %1221 = vmatpush1.msra.mxu0 0.0
        %1222 = vmatprep.subr.mxu0 0.0
        %1223 = vmatpush1.msra.mxu0 0.0
        %1224 = vmatprep.subr.mxu0 0.0
        %1225 = vmatpush1.msra.mxu0 0.0
        %1226 = vmatprep.subr.mxu0 0.0
        %1227 = vmatpush1.msra.mxu0 0.0
        %1228 = vmatprep.subr.mxu0 0.0
        %1229 = vmatpush1.msra.mxu0 0.0
        %1230 = vmatprep.subr.mxu0 0.0
        %1231 = vmatpush1.msra.mxu0 0.0
        %1232 = vmatprep.subr.mxu0 0.0
        %1233 = vmatpush1.msra.mxu0 0.0
        %1234 = vmatprep.subr.mxu0 0.0
        %1235 = vmatpush1.msra.mxu0 0.0
        %1236 = vmatprep.subr.mxu0 0.0
        %1237 = vmatpush1.msra.mxu0 0.0
        %1238 = vmatprep.subr.mxu0 0.0
        %1239 = vmatpush1.msra.mxu0 0.0
        %1240 = vmatprep.subr.mxu0 0.0
        %1241 = vmatpush1.msra.mxu0 0.0
        %1242 = vmatprep.subr.mxu0 0.0
        %1243 = vmatpush1.msra.mxu0 0.0
        %1244 = vmatprep.subr.mxu0 0.0
        %1245 = vmatpush1.msra.mxu0 0.0
        %1246 = vmatprep.subr.mxu0 0.0
        %1247 = vmatpush1.msra.mxu0 0.0
        %1248 = vmatprep.subr.mxu0 0.0
        %1249 = vmatpush1.msra.mxu0 0.0
        %1250 = vmatprep.subr.mxu0 0.0
        %1251 = vmatpush1.msra.mxu0 0.0
        %1252 = vmatprep.subr.mxu0 0.0
        %1253 = vmatpush1.msra.mxu0 0.0
        %1254 = vmatprep.subr.mxu0 0.0
        %1255 = vmatpush1.msra.mxu0 0.0
        %1256 = vmatprep.subr.mxu0 0.0
        %1257 = vmatpush1.msra.mxu0 0.0
        %1258 = vmatprep.subr.mxu0 0.0
        %1259 = vmatpush1.msra.mxu0 0.0
        %1260 = vmatprep.subr.mxu0 0.0
        %1261 = vmatpush1.msra.mxu0 0.0
        %1262 = vmatprep.mubr.f32.mxu0 0.0
        %1263 = vmatmul.mubr.f32.gmra.mrb[0].mxu0 %v1187
        %v1264 = vpop.f32.mrb[0].mxu0
        %v1265 = vadd.f32 0.0, %v1264
        %v1266 = vpop.f32.mrb[0].mxu0
        %1267 = vmatprep.mubr.f32.mxu0 0.0
        %1268 = vmatmul.mubr.f32.gmra.mrb[0].mxu0 %v1190
        %v1269 = vpop.f32.mrb[0].mxu0
        %v1270 = vadd.f32 0.0, %v1269
        %v1271 = vpop.f32.mrb[0].mxu0
        %1272 = vmatprep.mubr.f32.mxu0 0.0
        %1273 = vmatmul.mubr.f32.gmra.mrb[0].mxu0 %v1193
        %v1274 = vpop.f32.mrb[0].mxu0
        %v1275 = vadd.f32 0.0, %v1274
        %v1276 = vpop.f32.mrb[0].mxu0
        %1277 = vmatprep.mubr.f32.mxu0 0.0
        %1278 = vmatmul.mubr.f32.gmra.mrb[0].mxu0 %v1196
        %v1279 = vpop.f32.mrb[0].mxu0
        %v1280 = vadd.f32 0.0, %v1279
        %v1281 = vpop.f32.mrb[0].mxu0
        %1282 = vdwg.mxu0
        %1283 = vst.msk [vmem:[%s437] sm:$0xff] %vm460, %v1265
        %1284 = vst.msk [vmem:[%s437 + $0x8] sm:$0xff] %vm460, %v1270
        %1285 = vst.msk [vmem:[%s437 + $0x10] sm:$0xff] %vm460, %v1275
        %1286 = vst.msk [vmem:[%s437 + $0x18] sm:$0xff] %vm460, %v1280
        %v1287 = vld [vmem:[%s3] sm:$0xff]
        %v1288 = vld [vmem:[%s3 + $0x8] sm:$0xff]
        %v1290 = vsel %vm460, %v1287, 0
        %v1293 = vsel %vm460, %v1288, 0
        %1295 = vmatprep.subr.mxu0 0.0
        %1296 = vmatpush1.msra.mxu0 %v1265
        %1297 = vmatprep.subr.mxu0 0.0
        %1298 = vmatpush1.msra.mxu0 %v1270
        %1299 = vmatprep.subr.mxu0 0.0
        %1300 = vmatpush1.msra.mxu0 %v1275
        %1301 = vmatprep.subr.mxu0 0.0
        %1302 = vmatpush1.msra.mxu0 %v1280
        %1303 = vmatprep.subr.mxu0 0.0
        %1304 = vmatpush1.msra.mxu0 0.0
        %1305 = vmatprep.subr.mxu0 0.0
        %1306 = vmatpush1.msra.mxu0 0.0
        %1307 = vmatprep.subr.mxu0 0.0
        %1308 = vmatpush1.msra.mxu0 0.0
        %1309 = vmatprep.subr.mxu0 0.0
        %1310 = vmatpush1.msra.mxu0 0.0
        %1311 = vmatprep.subr.mxu0 0.0
        %1312 = vmatpush1.msra.mxu0 0.0
        %1313 = vmatprep.subr.mxu0 0.0
        %1314 = vmatpush1.msra.mxu0 0.0
        %1315 = vmatprep.subr.mxu0 0.0
        %1316 = vmatpush1.msra.mxu0 0.0
        %1317 = vmatprep.subr.mxu0 0.0
        %1318 = vmatpush1.msra.mxu0 0.0
        %1319 = vmatprep.subr.mxu0 0.0
        %1320 = vmatpush1.msra.mxu0 0.0
        %1321 = vmatprep.subr.mxu0 0.0
        %1322 = vmatpush1.msra.mxu0 0.0
        %1323 = vmatprep.subr.mxu0 0.0
        %1324 = vmatpush1.msra.mxu0 0.0
        %1325 = vmatprep.subr.mxu0 0.0
        %1326 = vmatpush1.msra.mxu0 0.0
        %1327 = vmatprep.subr.mxu0 0.0
        %1328 = vmatpush1.msra.mxu0 0.0
        %1329 = vmatprep.subr.mxu0 0.0
        %1330 = vmatpush1.msra.mxu0 0.0
        %1331 = vmatprep.subr.mxu0 0.0
        %1332 = vmatpush1.msra.mxu0 0.0
        %1333 = vmatprep.subr.mxu0 0.0
        %1334 = vmatpush1.msra.mxu0 0.0
        %1335 = vmatprep.subr.mxu0 0.0
        %1336 = vmatpush1.msra.mxu0 0.0
        %1337 = vmatprep.subr.mxu0 0.0
        %1338 = vmatpush1.msra.mxu0 0.0
        %1339 = vmatprep.subr.mxu0 0.0
        %1340 = vmatpush1.msra.mxu0 0.0
        %1341 = vmatprep.subr.mxu0 0.0
        %1342 = vmatpush1.msra.mxu0 0.0
        %1343 = vmatprep.subr.mxu0 0.0
        %1344 = vmatpush1.msra.mxu0 0.0
        %1345 = vmatprep.subr.mxu0 0.0
        %1346 = vmatpush1.msra.mxu0 0.0
        %1347 = vmatprep.subr.mxu0 0.0
        %1348 = vmatpush1.msra.mxu0 0.0
        %1349 = vmatprep.subr.mxu0 0.0
        %1350 = vmatpush1.msra.mxu0 0.0
        %1351 = vmatprep.subr.mxu0 0.0
        %1352 = vmatpush1.msra.mxu0 0.0
        %1353 = vmatprep.subr.mxu0 0.0
        %1354 = vmatpush1.msra.mxu0 0.0
        %1355 = vmatprep.subr.mxu0 0.0
        %1356 = vmatpush1.msra.mxu0 0.0
        %1357 = vmatprep.subr.mxu0 0.0
        %1358 = vmatpush1.msra.mxu0 0.0
        %1359 = vmatprep.mubr.f32.mxu0 0.0
        %1360 = vmatmul.mubr.f32.gmra.mrb[0].mxu0 %v1290
        %v1361 = vpop.f32.mrb[0].mxu0
        %v1362 = vadd.f32 0.0, %v1361
        %v1363 = vpop.f32.mrb[0].mxu0
        %1364 = vmatprep.mubr.f32.mxu0 0.0
        %1365 = vmatmul.mubr.f32.gmra.mrb[0].mxu0 %v1293
        %v1366 = vpop.f32.mrb[0].mxu0
        %v1367 = vadd.f32 0.0, %v1366
        %v1368 = vpop.f32.mrb[0].mxu0
        %1369 = vdwg.mxu0
        %v1370 = vld [vmem:[%s4] sm:$0xff]
        %v1371 = vld [vmem:[%s4 + $0x8] sm:$0xff]
        %v1372 = vld [vmem:[%s4 + $0x10] sm:$0xff]
        %v1373 = vld [vmem:[%s4 + $0x18] sm:$0xff]
        %v1375 = vsel %vm460, %v1362, 0
        %v1378 = vsel %vm460, %v1367, 0
        %1380 = vmatprep.subr.mxu0 0.0
        %1381 = vmatpush1.msra.mxu0 %v1370
        %1382 = vmatprep.subr.mxu0 0.0
        %1383 = vmatpush1.msra.mxu0 %v1371
        %1384 = vmatprep.subr.mxu0 0.0
        %1385 = vmatpush1.msra.mxu0 %v1372
        %1386 = vmatprep.subr.mxu0 0.0
        %1387 = vmatpush1.msra.mxu0 %v1373
        %1388 = vmatprep.subr.mxu0 0.0
        %1389 = vmatpush1.msra.mxu0 0.0
        %1390 = vmatprep.subr.mxu0 0.0
        %1391 = vmatpush1.msra.mxu0 0.0
        %1392 = vmatprep.subr.mxu0 0.0
        %1393 = vmatpush1.msra.mxu0 0.0
        %1394 = vmatprep.subr.mxu0 0.0
        %1395 = vmatpush1.msra.mxu0 0.0
        %1396 = vmatprep.subr.mxu0 0.0
        %1397 = vmatpush1.msra.mxu0 0.0
        %1398 = vmatprep.subr.mxu0 0.0
        %1399 = vmatpush1.msra.mxu0 0.0
        %1400 = vmatprep.subr.mxu0 0.0
        %1401 = vmatpush1.msra.mxu0 0.0
        %1402 = vmatprep.subr.mxu0 0.0
        %1403 = vmatpush1.msra.mxu0 0.0
        %1404 = vmatprep.subr.mxu0 0.0
        %1405 = vmatpush1.msra.mxu0 0.0
        %1406 = vmatprep.subr.mxu0 0.0
        %1407 = vmatpush1.msra.mxu0 0.0
        %1408 = vmatprep.subr.mxu0 0.0
        %1409 = vmatpush1.msra.mxu0 0.0
        %1410 = vmatprep.subr.mxu0 0.0
        %1411 = vmatpush1.msra.mxu0 0.0
        %1412 = vmatprep.subr.mxu0 0.0
        %1413 = vmatpush1.msra.mxu0 0.0
        %1414 = vmatprep.subr.mxu0 0.0
        %1415 = vmatpush1.msra.mxu0 0.0
        %1416 = vmatprep.subr.mxu0 0.0
        %1417 = vmatpush1.msra.mxu0 0.0
        %1418 = vmatprep.subr.mxu0 0.0
        %1419 = vmatpush1.msra.mxu0 0.0
        %1420 = vmatprep.subr.mxu0 0.0
        %1421 = vmatpush1.msra.mxu0 0.0
        %1422 = vmatprep.subr.mxu0 0.0
        %1423 = vmatpush1.msra.mxu0 0.0
        %1424 = vmatprep.subr.mxu0 0.0
        %1425 = vmatpush1.msra.mxu0 0.0
        %1426 = vmatprep.subr.mxu0 0.0
        %1427 = vmatpush1.msra.mxu0 0.0
        %1428 = vmatprep.subr.mxu0 0.0
        %1429 = vmatpush1.msra.mxu0 0.0
        %1430 = vmatprep.subr.mxu0 0.0
        %1431 = vmatpush1.msra.mxu0 0.0
        %1432 = vmatprep.subr.mxu0 0.0
        %1433 = vmatpush1.msra.mxu0 0.0
        %1434 = vmatprep.subr.mxu0 0.0
        %1435 = vmatpush1.msra.mxu0 0.0
        %1436 = vmatprep.subr.mxu0 0.0
        %1437 = vmatpush1.msra.mxu0 0.0
        %1438 = vmatprep.subr.mxu0 0.0
        %1439 = vmatpush1.msra.mxu0 0.0
        %1440 = vmatprep.subr.mxu0 0.0
        %1441 = vmatpush1.msra.mxu0 0.0
        %1442 = vmatprep.subr.mxu0 0.0
        %1443 = vmatpush1.msra.mxu0 0.0
        %1444 = vmatprep.mubr.f32.mxu0 0.0
        %1445 = vmatmul.mubr.f32.gmra.mrb[0].mxu0 %v1375
        %v1446 = vpop.f32.mrb[0].mxu0
        %v1447 = vadd.f32 0.0, %v1446
        %v1448 = vpop.f32.mrb[0].mxu0
        %1449 = vmatprep.mubr.f32.mxu0 0.0
        %1450 = vmatmul.mubr.f32.gmra.mrb[0].mxu0 %v1378
        %v1451 = vpop.f32.mrb[0].mxu0
        %v1452 = vadd.f32 0.0, %v1451
        %v1453 = vpop.f32.mrb[0].mxu0
        %1454 = vdwg.mxu0
        %vm1455 = vcmask 130048
        %1456 = vst.msk [vmem:[%s451] sm:$0xff] %vm1455, %v1447
        %1457 = vst.msk [vmem:[%s451 + $0x8] sm:$0xff] %vm1455, %v1452
        %s1458 = scalar_lea.vmem [#allocation5], 128
        %v1459 = vld [vmem:[%s1458] sm:$0xff]
        %v1460 = vld [vmem:[%s1458 + $0x8] sm:$0xff]
        %v1461 = vld [vmem:[%s1458 + $0x10] sm:$0xff]
        %v1462 = vld [vmem:[%s1458 + $0x18] sm:$0xff]
        %v1464 = vsel %vm460, %v1459, 0
        %v1467 = vsel %vm460, %v1460, 0
        %v1470 = vsel %vm460, %v1461, 0
        %v1473 = vsel %vm460, %v1462, 0
        %1475 = vmatprep.subr.mxu0 0.0
        %1476 = vmatpush1.msra.mxu0 %v1265
        %1477 = vmatprep.subr.mxu0 0.0
        %1478 = vmatpush1.msra.mxu0 %v1270
        %1479 = vmatprep.subr.mxu0 0.0
        %1480 = vmatpush1.msra.mxu0 %v1275
        %1481 = vmatprep.subr.mxu0 0.0
        %1482 = vmatpush1.msra.mxu0 %v1280
        %1483 = vmatprep.subr.mxu0 0.0
        %1484 = vmatpush1.msra.mxu0 0.0
        %1485 = vmatprep.subr.mxu0 0.0
        %1486 = vmatpush1.msra.mxu0 0.0
        %1487 = vmatprep.subr.mxu0 0.0
        %1488 = vmatpush1.msra.mxu0 0.0
        %1489 = vmatprep.subr.mxu0 0.0
        %1490 = vmatpush1.msra.mxu0 0.0
        %1491 = vmatprep.subr.mxu0 0.0
        %1492 = vmatpush1.msra.mxu0 0.0
        %1493 = vmatprep.subr.mxu0 0.0
        %1494 = vmatpush1.msra.mxu0 0.0
        %1495 = vmatprep.subr.mxu0 0.0
        %1496 = vmatpush1.msra.mxu0 0.0
        %1497 = vmatprep.subr.mxu0 0.0
        %1498 = vmatpush1.msra.mxu0 0.0
        %1499 = vmatprep.subr.mxu0 0.0
        %1500 = vmatpush1.msra.mxu0 0.0
        %1501 = vmatprep.subr.mxu0 0.0
        %1502 = vmatpush1.msra.mxu0 0.0
        %1503 = vmatprep.subr.mxu0 0.0
        %1504 = vmatpush1.msra.mxu0 0.0
        %1505 = vmatprep.subr.mxu0 0.0
        %1506 = vmatpush1.msra.mxu0 0.0
        %1507 = vmatprep.subr.mxu0 0.0
        %1508 = vmatpush1.msra.mxu0 0.0
        %1509 = vmatprep.subr.mxu0 0.0
        %1510 = vmatpush1.msra.mxu0 0.0
        %1511 = vmatprep.subr.mxu0 0.0
        %1512 = vmatpush1.msra.mxu0 0.0
        %1513 = vmatprep.subr.mxu0 0.0
        %1514 = vmatpush1.msra.mxu0 0.0
        %1515 = vmatprep.subr.mxu0 0.0
        %1516 = vmatpush1.msra.mxu0 0.0
        %1517 = vmatprep.subr.mxu0 0.0
        %1518 = vmatpush1.msra.mxu0 0.0
        %1519 = vmatprep.subr.mxu0 0.0
        %1520 = vmatpush1.msra.mxu0 0.0
        %1521 = vmatprep.subr.mxu0 0.0
        %1522 = vmatpush1.msra.mxu0 0.0
        %1523 = vmatprep.subr.mxu0 0.0
        %1524 = vmatpush1.msra.mxu0 0.0
        %1525 = vmatprep.subr.mxu0 0.0
        %1526 = vmatpush1.msra.mxu0 0.0
        %1527 = vmatprep.subr.mxu0 0.0
        %1528 = vmatpush1.msra.mxu0 0.0
        %1529 = vmatprep.subr.mxu0 0.0
        %1530 = vmatpush1.msra.mxu0 0.0
        %1531 = vmatprep.subr.mxu0 0.0
        %1532 = vmatpush1.msra.mxu0 0.0
        %1533 = vmatprep.subr.mxu0 0.0
        %1534 = vmatpush1.msra.mxu0 0.0
        %1535 = vmatprep.subr.mxu0 0.0
        %1536 = vmatpush1.msra.mxu0 0.0
        %1537 = vmatprep.subr.mxu0 0.0
        %1538 = vmatpush1.msra.mxu0 0.0
        %1539 = vmatprep.mubr.f32.mxu0 0.0
        %1540 = vmatmul.mubr.f32.gmra.mrb[0].mxu0 %v1464
        %v1541 = vpop.f32.mrb[0].mxu0
        %v1542 = vadd.f32 0.0, %v1541
        %v1543 = vpop.f32.mrb[0].mxu0
        %1544 = vmatprep.mubr.f32.mxu0 0.0
        %1545 = vmatmul.mubr.f32.gmra.mrb[0].mxu0 %v1467
        %v1546 = vpop.f32.mrb[0].mxu0
        %v1547 = vadd.f32 0.0, %v1546
        %v1548 = vpop.f32.mrb[0].mxu0
        %1549 = vmatprep.mubr.f32.mxu0 0.0
        %1550 = vmatmul.mubr.f32.gmra.mrb[0].mxu0 %v1470
        %v1551 = vpop.f32.mrb[0].mxu0
        %v1552 = vadd.f32 0.0, %v1551
        %v1553 = vpop.f32.mrb[0].mxu0
        %1554 = vmatprep.mubr.f32.mxu0 0.0
        %1555 = vmatmul.mubr.f32.gmra.mrb[0].mxu0 %v1473
        %v1556 = vpop.f32.mrb[0].mxu0
        %v1557 = vadd.f32 0.0, %v1556
        %v1558 = vpop.f32.mrb[0].mxu0
        %1559 = vdwg.mxu0
        %s1560 = scalar_lea.vmem [#allocation7], 128
        %v1561 = vld [vmem:[%s1560] sm:$0xff]
        %v1562 = vld [vmem:[%s1560 + $0x8] sm:$0xff]
        %v1563 = vld [vmem:[%s1560 + $0x10] sm:$0xff]
        %v1564 = vld [vmem:[%s1560 + $0x18] sm:$0xff]
        %v1566 = vsel %vm460, %v1542, 0
        %v1569 = vsel %vm460, %v1547, 0
        %v1572 = vsel %vm460, %v1552, 0
        %v1575 = vsel %vm460, %v1557, 0
        %1577 = vmatprep.subr.mxu0 0.0
        %1578 = vmatpush1.msra.mxu0 %v1561
        %1579 = vmatprep.subr.mxu0 0.0
        %1580 = vmatpush1.msra.mxu0 %v1562
        %1581 = vmatprep.subr.mxu0 0.0
        %1582 = vmatpush1.msra.mxu0 %v1563
        %1583 = vmatprep.subr.mxu0 0.0
        %1584 = vmatpush1.msra.mxu0 %v1564
        %1585 = vmatprep.subr.mxu0 0.0
        %1586 = vmatpush1.msra.mxu0 0.0
        %1587 = vmatprep.subr.mxu0 0.0
        %1588 = vmatpush1.msra.mxu0 0.0
        %1589 = vmatprep.subr.mxu0 0.0
        %1590 = vmatpush1.msra.mxu0 0.0
        %1591 = vmatprep.subr.mxu0 0.0
        %1592 = vmatpush1.msra.mxu0 0.0
        %1593 = vmatprep.subr.mxu0 0.0
        %1594 = vmatpush1.msra.mxu0 0.0
        %1595 = vmatprep.subr.mxu0 0.0
        %1596 = vmatpush1.msra.mxu0 0.0
        %1597 = vmatprep.subr.mxu0 0.0
        %1598 = vmatpush1.msra.mxu0 0.0
        %1599 = vmatprep.subr.mxu0 0.0
        %1600 = vmatpush1.msra.mxu0 0.0
        %1601 = vmatprep.subr.mxu0 0.0
        %1602 = vmatpush1.msra.mxu0 0.0
        %1603 = vmatprep.subr.mxu0 0.0
        %1604 = vmatpush1.msra.mxu0 0.0
        %1605 = vmatprep.subr.mxu0 0.0
        %1606 = vmatpush1.msra.mxu0 0.0
        %1607 = vmatprep.subr.mxu0 0.0
        %1608 = vmatpush1.msra.mxu0 0.0
        %1609 = vmatprep.subr.mxu0 0.0
        %1610 = vmatpush1.msra.mxu0 0.0
        %1611 = vmatprep.subr.mxu0 0.0
        %1612 = vmatpush1.msra.mxu0 0.0
        %1613 = vmatprep.subr.mxu0 0.0
        %1614 = vmatpush1.msra.mxu0 0.0
        %1615 = vmatprep.subr.mxu0 0.0
        %1616 = vmatpush1.msra.mxu0 0.0
        %1617 = vmatprep.subr.mxu0 0.0
        %1618 = vmatpush1.msra.mxu0 0.0
        %1619 = vmatprep.subr.mxu0 0.0
        %1620 = vmatpush1.msra.mxu0 0.0
        %1621 = vmatprep.subr.mxu0 0.0
        %1622 = vmatpush1.msra.mxu0 0.0
        %1623 = vmatprep.subr.mxu0 0.0
        %1624 = vmatpush1.msra.mxu0 0.0
        %1625 = vmatprep.subr.mxu0 0.0
        %1626 = vmatpush1.msra.mxu0 0.0
        %1627 = vmatprep.subr.mxu0 0.0
        %1628 = vmatpush1.msra.mxu0 0.0
        %1629 = vmatprep.subr.mxu0 0.0
        %1630 = vmatpush1.msra.mxu0 0.0
        %1631 = vmatprep.subr.mxu0 0.0
        %1632 = vmatpush1.msra.mxu0 0.0
        %1633 = vmatprep.subr.mxu0 0.0
        %1634 = vmatpush1.msra.mxu0 0.0
        %1635 = vmatprep.subr.mxu0 0.0
        %1636 = vmatpush1.msra.mxu0 0.0
        %1637 = vmatprep.subr.mxu0 0.0
        %1638 = vmatpush1.msra.mxu0 0.0
        %1639 = vmatprep.subr.mxu0 0.0
        %1640 = vmatpush1.msra.mxu0 0.0
        %1641 = vmatprep.mubr.f32.mxu0 0.0
        %1642 = vmatmul.mubr.f32.gmra.mrb[0].mxu0 %v1566
        %v1643 = vpop.f32.mrb[0].mxu0
        %v1644 = vadd.f32 0.0, %v1643
        %v1645 = vpop.f32.mrb[0].mxu0
        %1646 = vmatprep.mubr.f32.mxu0 0.0
        %1647 = vmatmul.mubr.f32.gmra.mrb[0].mxu0 %v1569
        %v1648 = vpop.f32.mrb[0].mxu0
        %v1649 = vadd.f32 0.0, %v1648
        %v1650 = vpop.f32.mrb[0].mxu0
        %1651 = vmatprep.mubr.f32.mxu0 0.0
        %1652 = vmatmul.mubr.f32.gmra.mrb[0].mxu0 %v1572
        %v1653 = vpop.f32.mrb[0].mxu0
        %v1654 = vadd.f32 0.0, %v1653
        %v1655 = vpop.f32.mrb[0].mxu0
        %1656 = vmatprep.mubr.f32.mxu0 0.0
        %1657 = vmatmul.mubr.f32.gmra.mrb[0].mxu0 %v1575
        %v1658 = vpop.f32.mrb[0].mxu0
        %v1659 = vadd.f32 0.0, %v1658
        %v1660 = vpop.f32.mrb[0].mxu0
        %1661 = vdwg.mxu0
        %1662 = vst.msk [vmem:[%s444] sm:$0xff] %vm460, %v1644
        %1663 = vst.msk [vmem:[%s444 + $0x8] sm:$0xff] %vm460, %v1649
        %1664 = vst.msk [vmem:[%s444 + $0x10] sm:$0xff] %vm460, %v1654
        %1665 = vst.msk [vmem:[%s444 + $0x18] sm:$0xff] %vm460, %v1659
        %s1666 = sand.u32 %s156, 1
        %s1667 = scalar_lea.sflag [#allocation4], %s1666
        %s1668 = sand.u32 %s156, 1
        %s1669 = smul.addr %s1668, 32
        %s1670 = scalar_lea.vmem [#allocation8], %s1669
        %s1671 = sand.u32 %s38, 1
        %s1672 = scalar_lea.sflag [#allocation10], %s1671
        %s1673 = sand.u32 %s182, 1
        %s1674 = smul.addr %s1673, 32
        %s1675 = scalar_lea.vmem [#allocation9], %s1674
        %s1676 = sand.u32 %s38, 1
        %s1677 = scalar_lea.sflag [#allocation10], %s1676
        %s1678 = sand.u32 %s208, 1
        %s1679 = smul.addr %s1678, 32
        %s1680 = scalar_lea.vmem [#allocation11], %s1679
        %s1681 = sand.u32 %s38, 1
        %s1682 = scalar_lea.sflag [#allocation13], %s1681
        %s1683 = sand.u32 %s234, 1
        %s1684 = smul.addr %s1683, 32
        %s1685 = scalar_lea.vmem [#allocation12], %s1684
        %s1686 = sand.u32 %s38, 1
        %s1687 = scalar_lea.sflag [#allocation13], %s1686
        %s1688 = sand.u32 %s260, 1
        %s1689 = smul.addr %s1688, 32
        %s1690 = scalar_lea.vmem [#allocation14], %s1689
        %s1691 = sand.u32 %s286, 1
        %s1692 = scalar_lea.sflag [#allocation16], %s1691
        %s1693 = sand.u32 %s286, 1
        %s1694 = smul.addr %s1693, 16
        %s1695 = scalar_lea.vmem [#allocation15], %s1694
        // Predicated region
        $region53: #{tpu_custom_call.1} parent=39 // pred_check
          %p1696 = pneg %p166
        $region54: #{tpu_custom_call.1} parent=39 // pred_check_branch
          %1698 = sbr.rel (%p1696) target = $region56
        $region55: #{tpu_custom_call.1} parent=39 // pred_region
          %s1700 = ssub.s32 512, 512
          %1701 = vsyncadd %s1667, %s1700
          %s1702 = smul.addr %s38, 4
          %s1703 = smul.addr %s1702, 128
          %s1704 = scalar_lea.hbm %s5, %s1703
          %s1705 = sshll.u32 %s1670, 4
          %s1706 = int_to_ptr.vmem [resolvable:$true] %s1705
          %1711 = dma.vmem_to_hbm [thread:$0]  %s1706, 512, %s1704, %s1667, 128, 128, 8
        $region56: #{tpu_custom_call.1} parent=39 // pred_fallthru
          _
        // Predicated region
        $region57: #{tpu_custom_call.1} parent=39 // pred_check
          %p1712 = pneg %p192
        $region58: #{tpu_custom_call.1} parent=39 // pred_check_branch
          %1714 = sbr.rel (%p1712) target = $region60
        $region59: #{tpu_custom_call.1} parent=39 // pred_region
          %s1716 = ssub.s32 512, 512
          %1717 = vsyncadd %s1672, %s1716
          %s1718 = smul.addr %s38, 4
          %s1719 = smul.addr %s1718, 128
          %s1720 = scalar_lea.hbm %s6, %s1719
          %s1721 = sshll.u32 %s1675, 4
          %s1722 = int_to_ptr.vmem [resolvable:$true] %s1721
          %1727 = dma.vmem_to_hbm [thread:$0]  %s1722, 512, %s1720, %s1672, 128, 128, 8
        $region60: #{tpu_custom_call.1} parent=39 // pred_fallthru
          _
        // Predicated region
        $region61: #{tpu_custom_call.1} parent=39 // pred_check
          %p1728 = pneg %p218
        $region62: #{tpu_custom_call.1} parent=39 // pred_check_branch
          %1730 = sbr.rel (%p1728) target = $region64
        $region63: #{tpu_custom_call.1} parent=39 // pred_region
          %s1732 = ssub.s32 512, 512
          %1733 = vsyncadd %s1677, %s1732
          %s1734 = smul.addr %s38, 4
          %s1735 = smul.addr %s1734, 128
          %s1736 = scalar_lea.hbm %s7, %s1735
          %s1737 = sshll.u32 %s1680, 4
          %s1738 = int_to_ptr.vmem [resolvable:$true] %s1737
          %1743 = dma.vmem_to_hbm [thread:$0]  %s1738, 512, %s1736, %s1677, 128, 128, 8
        $region64: #{tpu_custom_call.1} parent=39 // pred_fallthru
          _
        // Predicated region
        $region65: #{tpu_custom_call.1} parent=39 // pred_check
          %p1744 = pneg %p244
        $region66: #{tpu_custom_call.1} parent=39 // pred_check_branch
          %1746 = sbr.rel (%p1744) target = $region68
        $region67: #{tpu_custom_call.1} parent=39 // pred_region
          %s1748 = ssub.s32 512, 512
          %1749 = vsyncadd %s1682, %s1748
          %s1750 = smul.addr %s38, 4
          %s1751 = smul.addr %s1750, 128
          %s1752 = scalar_lea.hbm %s8, %s1751
          %s1753 = sshll.u32 %s1685, 4
          %s1754 = int_to_ptr.vmem [resolvable:$true] %s1753
          %1759 = dma.vmem_to_hbm [thread:$0]  %s1754, 512, %s1752, %s1682, 128, 128, 8
        $region68: #{tpu_custom_call.1} parent=39 // pred_fallthru
          _
        // Predicated region
        $region69: #{tpu_custom_call.1} parent=39 // pred_check
          %p1760 = pneg %p270
        $region70: #{tpu_custom_call.1} parent=39 // pred_check_branch
          %1762 = sbr.rel (%p1760) target = $region72
        $region71: #{tpu_custom_call.1} parent=39 // pred_region
          %s1764 = ssub.s32 512, 512
          %1765 = vsyncadd %s1687, %s1764
          %s1766 = smul.addr %s38, 4
          %s1767 = smul.addr %s1766, 128
          %s1768 = scalar_lea.hbm %s9, %s1767
          %s1769 = sshll.u32 %s1690, 4
          %s1770 = int_to_ptr.vmem [resolvable:$true] %s1769
          %1775 = dma.vmem_to_hbm [thread:$0]  %s1770, 512, %s1768, %s1687, 128, 128, 8
        $region72: #{tpu_custom_call.1} parent=39 // pred_fallthru
          _
        // Predicated region
        $region73: #{tpu_custom_call.1} parent=39 // pred_check
          %p1776 = pneg %p296
        $region74: #{tpu_custom_call.1} parent=39 // pred_check_branch
          %1778 = sbr.rel (%p1776) target = $region76
        $region75: #{tpu_custom_call.1} parent=39 // pred_region
          %s1780 = ssub.s32 256, 256
          %1781 = vsyncadd %s1692, %s1780
          %s1782 = smul.addr %s38, 2
          %s1783 = smul.addr %s1782, 128
          %s1784 = scalar_lea.hbm %s10, %s1783
          %s1785 = sshll.u32 %s1695, 4
          %s1786 = int_to_ptr.vmem [resolvable:$true] %s1785
          %1791 = dma.vmem_to_hbm [thread:$0]  %s1786, 256, %s1784, %s1692, 128, 128, 8
        $region76: #{tpu_custom_call.1} parent=39 // pred_fallthru
          _
      $region40: #{tpu_custom_call.1} parent=5 // pred_fallthru
        _
      %p1792 = scmp.le.s32.totalorder 2, %s33
      // Predicated region
      $region77: #{tpu_custom_call.1} parent=5 // pred_check
        %p1793 = pneg %p1792
      $region78: #{tpu_custom_call.1} parent=5 // pred_check_branch
        %1795 = sbr.rel (%p1793) target = $region80
      $region79: #{tpu_custom_call.1} parent=5 // pred_region
        %s1796 = ssub.s32 %s33, 2
        // Predicated region
        $region81: #{tpu_custom_call.1} parent=79 // pred_check
          %p1797 = pneg %p172
        $region82: #{tpu_custom_call.1} parent=79 // pred_check_branch
          %1799 = sbr.rel (%p1797) target = $region84
        $region83: #{tpu_custom_call.1} parent=79 // pred_region
          %s1800 = sand.u32 %s157, 1
          %s1801 = scalar_lea.sflag [#allocation4], %s1800
          %s1802 = sand.u32 %s157, 1
          %s1803 = smul.addr %s1802, 32
          %s1804 = scalar_lea.vmem [#allocation8], %s1803
          %1805 = dma.done %s1801, 512
        $region84: #{tpu_custom_call.1} parent=79 // pred_fallthru
          _
        // Predicated region
        $region85: #{tpu_custom_call.1} parent=79 // pred_check
          %p1806 = pneg %p198
        $region86: #{tpu_custom_call.1} parent=79 // pred_check_branch
          %1808 = sbr.rel (%p1806) target = $region88
        $region87: #{tpu_custom_call.1} parent=79 // pred_region
          %s1809 = sand.u32 %s39, 1
          %s1810 = scalar_lea.sflag [#allocation10], %s1809
          %s1811 = sand.u32 %s183, 1
          %s1812 = smul.addr %s1811, 32
          %s1813 = scalar_lea.vmem [#allocation9], %s1812
          %1814 = dma.done %s1810, 512
        $region88: #{tpu_custom_call.1} parent=79 // pred_fallthru
          _
        // Predicated region
        $region89: #{tpu_custom_call.1} parent=79 // pred_check
          %p1815 = pneg %p224
        $region90: #{tpu_custom_call.1} parent=79 // pred_check_branch
          %1817 = sbr.rel (%p1815) target = $region92
        $region91: #{tpu_custom_call.1} parent=79 // pred_region
          %s1818 = sand.u32 %s39, 1
          %s1819 = scalar_lea.sflag [#allocation10], %s1818
          %s1820 = sand.u32 %s209, 1
          %s1821 = smul.addr %s1820, 32
          %s1822 = scalar_lea.vmem [#allocation11], %s1821
          %1823 = dma.done %s1819, 512
        $region92: #{tpu_custom_call.1} parent=79 // pred_fallthru
          _
        // Predicated region
        $region93: #{tpu_custom_call.1} parent=79 // pred_check
          %p1824 = pneg %p250
        $region94: #{tpu_custom_call.1} parent=79 // pred_check_branch
          %1826 = sbr.rel (%p1824) target = $region96
        $region95: #{tpu_custom_call.1} parent=79 // pred_region
          %s1827 = sand.u32 %s39, 1
          %s1828 = scalar_lea.sflag [#allocation13], %s1827
          %s1829 = sand.u32 %s235, 1
          %s1830 = smul.addr %s1829, 32
          %s1831 = scalar_lea.vmem [#allocation12], %s1830
          %1832 = dma.done %s1828, 512
        $region96: #{tpu_custom_call.1} parent=79 // pred_fallthru
          _
        // Predicated region
        $region97: #{tpu_custom_call.1} parent=79 // pred_check
          %p1833 = pneg %p276
        $region98: #{tpu_custom_call.1} parent=79 // pred_check_branch
          %1835 = sbr.rel (%p1833) target = $region100
        $region99: #{tpu_custom_call.1} parent=79 // pred_region
          %s1836 = sand.u32 %s39, 1
          %s1837 = scalar_lea.sflag [#allocation13], %s1836
          %s1838 = sand.u32 %s261, 1
          %s1839 = smul.addr %s1838, 32
          %s1840 = scalar_lea.vmem [#allocation14], %s1839
          %1841 = dma.done %s1837, 512
        $region100: #{tpu_custom_call.1} parent=79 // pred_fallthru
          _
        // Predicated region
        $region101: #{tpu_custom_call.1} parent=79 // pred_check
          %p1842 = pneg %p302
        $region102: #{tpu_custom_call.1} parent=79 // pred_check_branch
          %1844 = sbr.rel (%p1842) target = $region104
        $region103: #{tpu_custom_call.1} parent=79 // pred_region
          %s1845 = sand.u32 %s287, 1
          %s1846 = scalar_lea.sflag [#allocation16], %s1845
          %s1847 = sand.u32 %s287, 1
          %s1848 = smul.addr %s1847, 16
          %s1849 = scalar_lea.vmem [#allocation15], %s1848
          %1850 = dma.done %s1846, 256
        $region104: #{tpu_custom_call.1} parent=79 // pred_fallthru
          _
      $region80: #{tpu_custom_call.1} parent=5 // pred_fallthru
        _
    $region6: #{tpu_custom_call.1} parent=1 // loop_footer
      %s37 = sadd.s32 1, %s33
    $region7: #{tpu_custom_call.1} parent=1 // loop_footer_branch
      %32 = sbr.rel target = $region3
    $region8: #{tpu_custom_call.1} parent=1 // loop_exit
      _
    %1851 = vsyncpa [#allocation3], 1
    %s1852 = scalar_lea.sflag [#allocation3], 1
    %1853 = vsyncpa %s1852, 1
    %1854 = vsyncpa [#allocation6], 1
    %1855 = vsyncpa [#allocation4], 1
    %s1856 = scalar_lea.sflag [#allocation4], 1
    %1857 = vsyncpa %s1856, 1
    %1858 = vsyncpa [#allocation10], 1
    %s1859 = scalar_lea.sflag [#allocation10], 1
    %1860 = vsyncpa %s1859, 1
    %1861 = vsyncpa [#allocation13], 1
    %s1862 = scalar_lea.sflag [#allocation13], 1
    %1863 = vsyncpa %s1862, 1
    %1864 = vsyncpa [#allocation16], 1
    %s1865 = scalar_lea.sflag [#allocation16], 1
    %1866 = vsyncpa %s1865, 1

</llo_original>
